<compile_context>
chip_gen: v5e
topology: v5e:2x2
jax: 0.10.0
libtpu: 0.0.40
codegen_flags: <defaults>
</compile_context>

<pallas_src>
import functools

import jax
import jax.numpy as jnp
from jax import lax
from jax.experimental import pallas as pl
from jax.experimental.pallas import tpu as pltpu

LN_EPS = 1e-5  # torch.nn.LayerNorm default


# ----------------------------- in-kernel math -------------------------------

def _layernorm(x, gamma, beta):
    mu = jnp.mean(x, axis=-1, keepdims=True)
    xc = x - mu
    var = jnp.mean(xc * xc, axis=-1, keepdims=True)
    return xc * lax.rsqrt(var + LN_EPS) * gamma + beta


def _gelu(x, approximate):
    if approximate:
        # tanh-GELU rides the EUP slot (cheaper on v6e/v7x); numerics differ
        # slightly from torch's exact GELU, so it is opt-in.
        return jax.nn.gelu(x, approximate=True)
    # torch.nn.GELU() default is the exact erf formulation.
    return 0.5 * x * (1.0 + lax.erf(x * (2.0 ** -0.5)))


# ------------------------------ fused kernel ---------------------------------

def _layer_kernel(x_ref, vecs_ref, b1_ref, wqkv_ref, wo_ref, w1_ref, w2_ref,
                  o_ref, xc_ref, *, heads, dim_head, matmul_dtype, gelu_approx):
    layer = pl.program_id(1)

    # Load the token slab from HBM only at layer 0; it then stays resident in
    # the VMEM scratch `xc_ref` for the whole depth loop of this batch tile.
    @pl.when(layer == 0)
    def _():
        xc_ref[...] = x_ref[...].astype(jnp.float32)

    # Packed per-layer vectors: [ln1_g, ln1_b, bo, ln2_g, ln2_b, b2].
    vecs = vecs_ref[0]                                   # (6, D) f32
    g1, be1, bo = vecs[0:1], vecs[1:2], vecs[2:3]
    g2, be2, b2 = vecs[3:4], vecs[4:5], vecs[5:6]
    b1 = b1_ref[0]                                       # (1, mlp) f32

    wqkv = wqkv_ref[0]                                   # (D, 3*inner) bf16/f32
    wo = wo_ref[0]                                       # (inner, D)
    w1 = w1_ref[0]                                       # (D, mlp)
    w2 = w2_ref[0]                                       # (mlp, D)

    inner = heads * dim_head
    dh = dim_head
    batch_tile = xc_ref.shape[0]

    def mm(a, b):
        return jnp.dot(a.astype(matmul_dtype), b,
                       preferred_element_type=jnp.float32)

    # Static unroll over the batch tile: one weight DMA serves batch_tile
    # batch elements.
    for bi in range(batch_tile):
        x = xc_ref[bi]                                   # (N, D) f32 carry

        # ------------------------ PreNorm attention -------------------------
        xn = _layernorm(x, g1, be1)
        # Fused q/k/v projection; the softmax scale is already folded into
        # the q columns of wqkv (wrapper side).
        qkv = mm(xn, wqkv)                               # (N, 3*inner) f32

        y = x + bo                                       # residual + out bias
        for h in range(heads):                           # unrolled, static
            q_h = qkv[:, h * dh:(h + 1) * dh]            # (N, dh)
            k_h = qkv[:, inner + h * dh:inner + (h + 1) * dh]
            v_h = qkv[:, 2 * inner + h * dh:2 * inner + (h + 1) * dh]

            # scores contract the last axes directly (no explicit k.T).
            dots = lax.dot_general(q_h.astype(matmul_dtype),
                                   k_h.astype(matmul_dtype),
                                   (((1,), (1,)), ((), ())),
                                   preferred_element_type=jnp.float32)
            m = jnp.max(dots, axis=-1, keepdims=True)
            e = jnp.exp(dots - m)                        # f32 (v5e-safe)
            p = e * pl.reciprocal(jnp.sum(e, axis=-1, keepdims=True),
                                  approx=True)

            ctx_h = mm(p, v_h.astype(matmul_dtype))      # (N, dh) f32
            # Accumulate the output projection per head straight into the
            # residual: no (H, N, D) intermediate, no post-hoc head-sum.
            y = y + mm(ctx_h, wo[h * dh:(h + 1) * dh, :])
        x = y

        # ----------------------- PreNorm feed-forward ------------------------
        xn2 = _layernorm(x, g2, be2)
        h1 = mm(xn2, w1) + b1                            # (N, mlp) f32
        h2 = mm(_gelu(h1, gelu_approx), w2) + b2         # (N, D) f32
        x = h2 + x
        # TODO(synk): dropout is identity in eval mode (dropout=0.0), omitted.

        xc_ref[bi] = x                                   # carry to next layer

    @pl.when(layer == pl.num_programs(1) - 1)
    def _():
        o_ref[...] = xc_ref[...].astype(o_ref.dtype)     # one HBM store / tile


# ------------------------------- wrapper --------------------------------------

def transformer_pallas(x, params, *, heads, dim_head,
                       matmul_dtype=jnp.bfloat16, batch_tile=1,
                       gelu_approx=False):
    B, N, D = x.shape
    depth = len(params)
    inner = heads * dim_head
    mlp = params[0]["w1"].shape[1]
    scale = dim_head ** -0.5
    assert B % batch_tile == 0, "batch_tile must divide the batch size"

    # --- wrapper-side, one-time weight re-layout (pure JAX, outside kernel) --
    #  * fuse wq (pre-scaled by 1/sqrt(dh)) and wkv into one (D, 3*inner) slab
    #  * cast all matmul weights to matmul_dtype (bf16 default)
    #  * stack every per-layer tensor along a leading depth axis
    def to_mm(w):
        return w.astype(matmul_dtype)

    wqkv = to_mm(jnp.stack(
        [jnp.concatenate([p["wq"] * scale, p["wkv"]], axis=1)
         for p in params]))                              # (L, D, 3*inner)
    wo = to_mm(jnp.stack([p["wo"] for p in params]))     # (L, inner, D)
    w1 = to_mm(jnp.stack([p["w1"] for p in params]))     # (L, D, mlp)
    w2 = to_mm(jnp.stack([p["w2"] for p in params]))     # (L, mlp, D)

    # Pack the six D-sized per-layer vectors into a single input stream.
    vecs = jnp.stack(
        [jnp.stack([p["ln1_g"], p["ln1_b"], p["bo"],
                    p["ln2_g"], p["ln2_b"], p["b2"]], axis=0)
         for p in params]).astype(jnp.float32)           # (L, 6, D)
    b1 = jnp.stack([p["b1"].reshape(1, mlp)
                    for p in params]).astype(jnp.float32)  # (L, 1, mlp)

    lyr = lambda shape: pl.BlockSpec(shape, lambda b, l: (l, 0, 0))
    bat = lambda shape: pl.BlockSpec(shape, lambda b, l: (b, 0, 0))

    kernel = functools.partial(_layer_kernel, heads=heads, dim_head=dim_head,
                               matmul_dtype=matmul_dtype,
                               gelu_approx=gelu_approx)

    # Advisory cost estimate so XLA schedules around the fused call sensibly.
    n_tiles = B // batch_tile
    wbytes = int((wqkv.size + wo.size + w1.size + w2.size)
                 * jnp.dtype(matmul_dtype).itemsize)
    flops = 2 * depth * B * (N * D * 3 * inner
                             + 2 * heads * N * N * dim_head
                             + N * inner * D
                             + 2 * N * D * mlp)
    cost = pl.CostEstimate(
        flops=int(flops),
        transcendentals=int(depth * B * (heads * N * N + N * mlp)),
        bytes_accessed=int(wbytes * n_tiles
                           + (vecs.size + b1.size) * 4 * n_tiles
                           + 2 * B * N * D * 4))

    return pl.pallas_call(
        kernel,
        out_shape=jax.ShapeDtypeStruct((B, N, D), x.dtype),
        grid=(n_tiles, depth),
        in_specs=[
            bat((batch_tile, N, D)),        # x
            lyr((1, 6, D)),                 # packed ln1 g/b, bo, ln2 g/b, b2
            lyr((1, 1, mlp)),               # b1
            lyr((1, D, 3 * inner)),         # fused wqkv (scale folded in)
            lyr((1, inner, D)),             # wo
            lyr((1, D, mlp)),               # w1
            lyr((1, mlp, D)),               # w2
        ],
        out_specs=bat((batch_tile, N, D)),
        scratch_shapes=[pltpu.VMEM((batch_tile, N, D), jnp.float32)],
        compiler_params=pltpu.CompilerParams(
            dimension_semantics=("parallel", "arbitrary"),
            vmem_limit_bytes=32 * 1024 * 1024),
        cost_estimate=cost,
    )(x, vecs, b1, wqkv, wo, w1, w2)


# ------------------------ parameters & pure-JAX reference --------------------

def init_params(key, dim, depth, heads, dim_head, mlp_dim):
    inner = heads * dim_head
    params = []
    for _ in range(depth):
        key, *ks = jax.random.split(key, 9)

        def u(k, shape, fan_in):
            bound = 1.0 / jnp.sqrt(fan_in)
            return jax.random.uniform(k, shape, jnp.float32, -bound, bound)

        params.append(dict(
            ln1_g=jnp.ones((dim,), jnp.float32),
            ln1_b=jnp.zeros((dim,), jnp.float32),
            wq=u(ks[0], (dim, inner), dim),
            wkv=u(ks[1], (dim, 2 * inner), dim),
            wo=u(ks[2], (inner, dim), inner),
            bo=u(ks[3], (dim,), inner),
            ln2_g=jnp.ones((dim,), jnp.float32),
            ln2_b=jnp.zeros((dim,), jnp.float32),
            w1=u(ks[4], (dim, mlp_dim), dim),
            b1=u(ks[5], (mlp_dim,), dim),
            w2=u(ks[6], (mlp_dim, dim), mlp_dim),
            b2=u(ks[7], (dim,), mlp_dim),
        ))
    return params


def transformer_ref(x, params, *, heads, dim_head):
    inner = heads * dim_head
    B, N, D = x.shape
    scale = dim_head ** -0.5
    for p in params:
        xn = _layernorm(x, p["ln1_g"], p["ln1_b"])
        q = xn @ p["wq"]
        kv = xn @ p["wkv"]
        k, v = kv[..., :inner], kv[..., inner:]
        qh = q.reshape(B, N, heads, dim_head).transpose(0, 2, 1, 3)
        kh = k.reshape(B, N, heads, dim_head).transpose(0, 2, 1, 3)
        vh = v.reshape(B, N, heads, dim_head).transpose(0, 2, 1, 3)
        dots = jnp.einsum("bhid,bhjd->bhij", qh, kh) * scale
        attn = jax.nn.softmax(dots, axis=-1)
        out = jnp.einsum("bhij,bhjd->bhid", attn, vh)
        out = out.transpose(0, 2, 1, 3).reshape(B, N, inner)
        x = out @ p["wo"] + p["bo"] + x

        xn = _layernorm(x, p["ln2_g"], p["ln2_b"])
        h = _gelu(xn @ p["w1"] + p["b1"], approximate=False)
        x = h @ p["w2"] + p["b2"] + x
    return x


# ---------------------------------- main --------------------------------------

if __name__ == "__main__":
    B, N, dim = 2, 8, 32
    depth, heads, dim_head, mlp_dim = 2, 4, 8, 64

    key = jax.random.PRNGKey(0)
    kx, kp = jax.random.split(key)
    x = jax.random.normal(kx, (B, N, dim), jnp.float32)
    params = init_params(kp, dim, depth, heads, dim_head, mlp_dim)

    ref = transformer_ref(x, params, heads=heads, dim_head=dim_head)

    # f32-matmul path (batch_tile=2: weights streamed once for both batch
    # elements).  Tight tolerance: only the approximate softmax reciprocal
    # differs from the pure-JAX reference.
    out_f32 = jax.block_until_ready(
        transformer_pallas(x, params, heads=heads, dim_head=dim_head,
                           matmul_dtype=jnp.float32, batch_tile=2))
    assert out_f32.shape == (B, N, dim)
    assert jnp.allclose(out_f32, ref, rtol=2e-3, atol=2e-3), \
        "f32 kernel mismatch vs reference"

    # Default bf16-matmul fast path (full-rate MXU on v5e/v6e/v7x), checked
    # against the f32 reference with a bf16-appropriate tolerance.
    out_bf16 = jax.block_until_ready(
        transformer_pallas(x, params, heads=heads, dim_head=dim_head))
    assert out_bf16.shape == (B, N, dim)
    assert bool(jnp.all(jnp.isfinite(out_bf16)))
    assert jnp.allclose(out_bf16, ref, rtol=1e-1, atol=1e-1), \
        "bf16 kernel mismatch vs reference"

    print("KERNEL_OK")
</pallas_src>

<mosaic_0001>
module attributes {stable_mosaic.version = 11 : i64} {
  func.func @_layer_kernel(%arg0: i32, %arg1: i32, %arg2: memref<2x8x32xf32, #tpu.memory_space<vmem>>, %arg3: memref<1x6x32xf32, #tpu.memory_space<vmem>>, %arg4: memref<1x1x64xf32, #tpu.memory_space<vmem>>, %arg5: memref<1x32x96xf32, #tpu.memory_space<vmem>>, %arg6: memref<1x32x32xf32, #tpu.memory_space<vmem>>, %arg7: memref<1x32x64xf32, #tpu.memory_space<vmem>>, %arg8: memref<1x64x32xf32, #tpu.memory_space<vmem>>, %arg9: memref<2x8x32xf32, #tpu.memory_space<vmem>>, %arg10: memref<2x8x32xf32, #tpu.memory_space<vmem>>) attributes {dimension_semantics = [#tpu.dimension_semantics<parallel>, #tpu.dimension_semantics<arbitrary>], iteration_bounds = array<i64: 1, 2>, scalar_prefetch = 0 : i64, scratch_operands = 1 : i64, tpu.core_type = #tpu.core_type<tc>, window_params = [{transform_indices = @transform_0, window_bounds = array<i64: 2, 8, 32>}, {transform_indices = @transform_1, window_bounds = array<i64: 1, 6, 32>}, {transform_indices = @transform_2, window_bounds = array<i64: 1, 1, 64>}, {transform_indices = @transform_3, window_bounds = array<i64: 1, 32, 96>}, {transform_indices = @transform_4, window_bounds = array<i64: 1, 32, 32>}, {transform_indices = @transform_5, window_bounds = array<i64: 1, 32, 64>}, {transform_indices = @transform_6, window_bounds = array<i64: 1, 64, 32>}, {transform_indices = @transform_7, window_bounds = array<i64: 2, 8, 32>}]} {
    %c0_i32 = arith.constant 0 : i32
    %0 = arith.cmpi eq, %arg1, %c0_i32 : i32
    %1 = arith.extui %0 : i1 to i32
    %c0_i32_0 = arith.constant 0 : i32
    %2 = arith.cmpi ne, %1, %c0_i32_0 : i32
    scf.if %2 {
      %c0_101 = arith.constant 0 : index
      %c0_102 = arith.constant 0 : index
      %c0_103 = arith.constant 0 : index
      %294 = vector.load %arg2[%c0_101, %c0_102, %c0_103] : memref<2x8x32xf32, #tpu.memory_space<vmem>>, vector<2x8x32xf32>
      %c0_104 = arith.constant 0 : index
      %c0_105 = arith.constant 0 : index
      %c0_106 = arith.constant 0 : index
      %295 = vector.load %arg10[%c0_104, %c0_105, %c0_106] : memref<2x8x32xf32, #tpu.memory_space<vmem>>, vector<2x8x32xf32>
      tpu.vector_store %arg10[%c0_104, %c0_105, %c0_106], %294 {strides = array<i32>} : memref<2x8x32xf32, #tpu.memory_space<vmem>>, vector<2x8x32xf32>,
    } else {
    }
    %c0 = arith.constant 0 : index
    %c0_1 = arith.constant 0 : index
    %c0_2 = arith.constant 0 : index
    %3 = vector.load %arg3[%c0, %c0_1, %c0_2] : memref<1x6x32xf32, #tpu.memory_space<vmem>>, vector<1x6x32xf32>
    %4 = vector.shape_cast %3 : vector<1x6x32xf32> to vector<6x32xf32>
    %5 = vector.extract_strided_slice %4 {offsets = [0, 0], sizes = [1, 32], strides = [1, 1]} : vector<6x32xf32> to vector<1x32xf32>
    %6 = vector.extract_strided_slice %4 {offsets = [1, 0], sizes = [1, 32], strides = [1, 1]} : vector<6x32xf32> to vector<1x32xf32>
    %7 = vector.extract_strided_slice %4 {offsets = [2, 0], sizes = [1, 32], strides = [1, 1]} : vector<6x32xf32> to vector<1x32xf32>
    %8 = vector.extract_strided_slice %4 {offsets = [3, 0], sizes = [1, 32], strides = [1, 1]} : vector<6x32xf32> to vector<1x32xf32>
    %9 = vector.extract_strided_slice %4 {offsets = [4, 0], sizes = [1, 32], strides = [1, 1]} : vector<6x32xf32> to vector<1x32xf32>
    %10 = vector.extract_strided_slice %4 {offsets = [5, 0], sizes = [1, 32], strides = [1, 1]} : vector<6x32xf32> to vector<1x32xf32>
    %c0_3 = arith.constant 0 : index
    %c0_4 = arith.constant 0 : index
    %c0_5 = arith.constant 0 : index
    %11 = vector.load %arg4[%c0_3, %c0_4, %c0_5] : memref<1x1x64xf32, #tpu.memory_space<vmem>>, vector<1x1x64xf32>
    %12 = vector.shape_cast %11 : vector<1x1x64xf32> to vector<1x64xf32>
    %c0_6 = arith.constant 0 : index
    %c0_7 = arith.constant 0 : index
    %c0_8 = arith.constant 0 : index
    %13 = vector.load %arg5[%c0_6, %c0_7, %c0_8] : memref<1x32x96xf32, #tpu.memory_space<vmem>>, vector<1x32x96xf32>
    %14 = vector.shape_cast %13 : vector<1x32x96xf32> to vector<32x96xf32>
    %c0_9 = arith.constant 0 : index
    %c0_10 = arith.constant 0 : index
    %c0_11 = arith.constant 0 : index
    %15 = vector.load %arg6[%c0_9, %c0_10, %c0_11] : memref<1x32x32xf32, #tpu.memory_space<vmem>>, vector<1x32x32xf32>
    %16 = vector.shape_cast %15 : vector<1x32x32xf32> to vector<32x32xf32>
    %c0_12 = arith.constant 0 : index
    %c0_13 = arith.constant 0 : index
    %c0_14 = arith.constant 0 : index
    %17 = vector.load %arg7[%c0_12, %c0_13, %c0_14] : memref<1x32x64xf32, #tpu.memory_space<vmem>>, vector<1x32x64xf32>
    %18 = vector.shape_cast %17 : vector<1x32x64xf32> to vector<32x64xf32>
    %c0_15 = arith.constant 0 : index
    %c0_16 = arith.constant 0 : index
    %c0_17 = arith.constant 0 : index
    %19 = vector.load %arg8[%c0_15, %c0_16, %c0_17] : memref<1x64x32xf32, #tpu.memory_space<vmem>>, vector<1x64x32xf32>
    %20 = vector.shape_cast %19 : vector<1x64x32xf32> to vector<64x32xf32>
    %c0_18 = arith.constant 0 : index
    %c0_19 = arith.constant 0 : index
    %c0_20 = arith.constant 0 : index
    %21 = vector.load %arg10[%c0_18, %c0_19, %c0_20] : memref<2x8x32xf32, #tpu.memory_space<vmem>>, vector<1x8x32xf32>
    %22 = vector.shape_cast %21 : vector<1x8x32xf32> to vector<8x32xf32>
    %cst = arith.constant dense<0.000000e+00> : vector<8xf32>
    %23 = vector.multi_reduction <add>, %22, %cst [1] : vector<8x32xf32> to vector<8xf32>
    %24 = vector.shape_cast %23 : vector<8xf32> to vector<8x1xf32>
    %cst_21 = arith.constant 3.200000e+01 : f32
    %25 = vector.broadcast %cst_21 : f32 to vector<8x1xf32>
    %26 = arith.divf %24, %25 : vector<8x1xf32>
    %27 = vector.broadcast %26 : vector<8x1xf32> to vector<8x32xf32>
    %28 = arith.subf %22, %27 : vector<8x32xf32>
    %29 = arith.mulf %28, %28 : vector<8x32xf32>
    %cst_22 = arith.constant dense<0.000000e+00> : vector<8xf32>
    %30 = vector.multi_reduction <add>, %29, %cst_22 [1] : vector<8x32xf32> to vector<8xf32>
    %31 = vector.shape_cast %30 : vector<8xf32> to vector<8x1xf32>
    %cst_23 = arith.constant 3.200000e+01 : f32
    %32 = vector.broadcast %cst_23 : f32 to vector<8x1xf32>
    %33 = arith.divf %31, %32 : vector<8x1xf32>
    %cst_24 = arith.constant 9.99999974E-6 : f32
    %34 = vector.broadcast %cst_24 : f32 to vector<8x1xf32>
    %35 = arith.addf %33, %34 : vector<8x1xf32>
    %36 = math.rsqrt %35 : vector<8x1xf32>
    %37 = vector.broadcast %36 : vector<8x1xf32> to vector<8x32xf32>
    %38 = arith.mulf %28, %37 : vector<8x32xf32>
    %39 = vector.broadcast %5 : vector<1x32xf32> to vector<8x32xf32>
    %40 = arith.mulf %38, %39 : vector<8x32xf32>
    %41 = vector.broadcast %6 : vector<1x32xf32> to vector<8x32xf32>
    %42 = arith.addf %40, %41 : vector<8x32xf32>
    %cst_25 = arith.constant dense<0.000000e+00> : vector<8x96xf32>
    %43 = tpu.matmul %42, %14, %cst_25 {dimension_numbers = #tpu.dot_dimension_numbers<[1], [0], [0], [1], [0, 0, 1, 1], [], []>} : vector<8x32xf32>, vector<32x96xf32>, vector<8x96xf32> -> vector<8x96xf32>
    %44 = vector.broadcast %7 : vector<1x32xf32> to vector<8x32xf32>
    %45 = arith.addf %22, %44 : vector<8x32xf32>
    %46 = vector.extract_strided_slice %43 {offsets = [0, 0], sizes = [8, 8], strides = [1, 1]} : vector<8x96xf32> to vector<8x8xf32>
    %47 = vector.extract_strided_slice %43 {offsets = [0, 32], sizes = [8, 8], strides = [1, 1]} : vector<8x96xf32> to vector<8x8xf32>
    %48 = vector.extract_strided_slice %43 {offsets = [0, 64], sizes = [8, 8], strides = [1, 1]} : vector<8x96xf32> to vector<8x8xf32>
    %cst_26 = arith.constant dense<0.000000e+00> : vector<8x8xf32>
    %49 = tpu.matmul %46, %47, %cst_26 {dimension_numbers = #tpu.dot_dimension_numbers<[1], [1], [0], [0], [0, 0, 1, 0], [], []>} : vector<8x8xf32>, vector<8x8xf32>, vector<8x8xf32> -> vector<8x8xf32>
    %cst_27 = arith.constant dense<0xFF800000> : vector<8xf32>
    %50 = vector.multi_reduction <maximumf>, %49, %cst_27 [1] : vector<8x8xf32> to vector<8xf32>
    %51 = vector.shape_cast %50 : vector<8xf32> to vector<8x1xf32>
    %52 = vector.broadcast %51 : vector<8x1xf32> to vector<8x8xf32>
    %53 = arith.subf %49, %52 : vector<8x8xf32>
    %54 = math.exp %53 : vector<8x8xf32>
    %cst_28 = arith.constant dense<0.000000e+00> : vector<8xf32>
    %55 = vector.multi_reduction <add>, %54, %cst_28 [1] : vector<8x8xf32> to vector<8xf32>
    %56 = vector.shape_cast %55 : vector<8xf32> to vector<8x1xf32>
    %57 = tpu.reciprocal %56 {approx = true} : vector<8x1xf32> -> vector<8x1xf32>
    %58 = vector.broadcast %57 : vector<8x1xf32> to vector<8x8xf32>
    %59 = arith.mulf %54, %58 : vector<8x8xf32>
    %cst_29 = arith.constant dense<0.000000e+00> : vector<8x8xf32>
    %60 = tpu.matmul %59, %48, %cst_29 {dimension_numbers = #tpu.dot_dimension_numbers<[1], [0], [0], [1], [0, 0, 1, 1], [], []>} : vector<8x8xf32>, vector<8x8xf32>, vector<8x8xf32> -> vector<8x8xf32>
    %61 = vector.extract_strided_slice %16 {offsets = [0, 0], sizes = [8, 32], strides = [1, 1]} : vector<32x32xf32> to vector<8x32xf32>
    %cst_30 = arith.constant dense<0.000000e+00> : vector<8x32xf32>
    %62 = tpu.matmul %60, %61, %cst_30 {dimension_numbers = #tpu.dot_dimension_numbers<[1], [0], [0], [1], [0, 0, 1, 1], [], []>} : vector<8x8xf32>, vector<8x32xf32>, vector<8x32xf32> -> vector<8x32xf32>
    %63 = arith.addf %45, %62 : vector<8x32xf32>
    %64 = vector.extract_strided_slice %43 {offsets = [0, 8], sizes = [8, 8], strides = [1, 1]} : vector<8x96xf32> to vector<8x8xf32>
    %65 = vector.extract_strided_slice %43 {offsets = [0, 40], sizes = [8, 8], strides = [1, 1]} : vector<8x96xf32> to vector<8x8xf32>
    %66 = vector.extract_strided_slice %43 {offsets = [0, 72], sizes = [8, 8], strides = [1, 1]} : vector<8x96xf32> to vector<8x8xf32>
    %cst_31 = arith.constant dense<0.000000e+00> : vector<8x8xf32>
    %67 = tpu.matmul %64, %65, %cst_31 {dimension_numbers = #tpu.dot_dimension_numbers<[1], [1], [0], [0], [0, 0, 1, 0], [], []>} : vector<8x8xf32>, vector<8x8xf32>, vector<8x8xf32> -> vector<8x8xf32>
    %cst_32 = arith.constant dense<0xFF800000> : vector<8xf32>
    %68 = vector.multi_reduction <maximumf>, %67, %cst_32 [1] : vector<8x8xf32> to vector<8xf32>
    %69 = vector.shape_cast %68 : vector<8xf32> to vector<8x1xf32>
    %70 = vector.broadcast %69 : vector<8x1xf32> to vector<8x8xf32>
    %71 = arith.subf %67, %70 : vector<8x8xf32>
    %72 = math.exp %71 : vector<8x8xf32>
    %cst_33 = arith.constant dense<0.000000e+00> : vector<8xf32>
    %73 = vector.multi_reduction <add>, %72, %cst_33 [1] : vector<8x8xf32> to vector<8xf32>
    %74 = vector.shape_cast %73 : vector<8xf32> to vector<8x1xf32>
    %75 = tpu.reciprocal %74 {approx = true} : vector<8x1xf32> -> vector<8x1xf32>
    %76 = vector.broadcast %75 : vector<8x1xf32> to vector<8x8xf32>
    %77 = arith.mulf %72, %76 : vector<8x8xf32>
    %cst_34 = arith.constant dense<0.000000e+00> : vector<8x8xf32>
    %78 = tpu.matmul %77, %66, %cst_34 {dimension_numbers = #tpu.dot_dimension_numbers<[1], [0], [0], [1], [0, 0, 1, 1], [], []>} : vector<8x8xf32>, vector<8x8xf32>, vector<8x8xf32> -> vector<8x8xf32>
    %79 = vector.extract_strided_slice %16 {offsets = [8, 0], sizes = [8, 32], strides = [1, 1]} : vector<32x32xf32> to vector<8x32xf32>
    %cst_35 = arith.constant dense<0.000000e+00> : vector<8x32xf32>
    %80 = tpu.matmul %78, %79, %cst_35 {dimension_numbers = #tpu.dot_dimension_numbers<[1], [0], [0], [1], [0, 0, 1, 1], [], []>} : vector<8x8xf32>, vector<8x32xf32>, vector<8x32xf32> -> vector<8x32xf32>
    %81 = arith.addf %63, %80 : vector<8x32xf32>
    %82 = vector.extract_strided_slice %43 {offsets = [0, 16], sizes = [8, 8], strides = [1, 1]} : vector<8x96xf32> to vector<8x8xf32>
    %83 = vector.extract_strided_slice %43 {offsets = [0, 48], sizes = [8, 8], strides = [1, 1]} : vector<8x96xf32> to vector<8x8xf32>
    %84 = vector.extract_strided_slice %43 {offsets = [0, 80], sizes = [8, 8], strides = [1, 1]} : vector<8x96xf32> to vector<8x8xf32>
    %cst_36 = arith.constant dense<0.000000e+00> : vector<8x8xf32>
    %85 = tpu.matmul %82, %83, %cst_36 {dimension_numbers = #tpu.dot_dimension_numbers<[1], [1], [0], [0], [0, 0, 1, 0], [], []>} : vector<8x8xf32>, vector<8x8xf32>, vector<8x8xf32> -> vector<8x8xf32>
    %cst_37 = arith.constant dense<0xFF800000> : vector<8xf32>
    %86 = vector.multi_reduction <maximumf>, %85, %cst_37 [1] : vector<8x8xf32> to vector<8xf32>
    %87 = vector.shape_cast %86 : vector<8xf32> to vector<8x1xf32>
    %88 = vector.broadcast %87 : vector<8x1xf32> to vector<8x8xf32>
    %89 = arith.subf %85, %88 : vector<8x8xf32>
    %90 = math.exp %89 : vector<8x8xf32>
    %cst_38 = arith.constant dense<0.000000e+00> : vector<8xf32>
    %91 = vector.multi_reduction <add>, %90, %cst_38 [1] : vector<8x8xf32> to vector<8xf32>
    %92 = vector.shape_cast %91 : vector<8xf32> to vector<8x1xf32>
    %93 = tpu.reciprocal %92 {approx = true} : vector<8x1xf32> -> vector<8x1xf32>
    %94 = vector.broadcast %93 : vector<8x1xf32> to vector<8x8xf32>
    %95 = arith.mulf %90, %94 : vector<8x8xf32>
    %cst_39 = arith.constant dense<0.000000e+00> : vector<8x8xf32>
    %96 = tpu.matmul %95, %84, %cst_39 {dimension_numbers = #tpu.dot_dimension_numbers<[1], [0], [0], [1], [0, 0, 1, 1], [], []>} : vector<8x8xf32>, vector<8x8xf32>, vector<8x8xf32> -> vector<8x8xf32>
    %97 = vector.extract_strided_slice %16 {offsets = [16, 0], sizes = [8, 32], strides = [1, 1]} : vector<32x32xf32> to vector<8x32xf32>
    %cst_40 = arith.constant dense<0.000000e+00> : vector<8x32xf32>
    %98 = tpu.matmul %96, %97, %cst_40 {dimension_numbers = #tpu.dot_dimension_numbers<[1], [0], [0], [1], [0, 0, 1, 1], [], []>} : vector<8x8xf32>, vector<8x32xf32>, vector<8x32xf32> -> vector<8x32xf32>
    %99 = arith.addf %81, %98 : vector<8x32xf32>
    %100 = vector.extract_strided_slice %43 {offsets = [0, 24], sizes = [8, 8], strides = [1, 1]} : vector<8x96xf32> to vector<8x8xf32>
    %101 = vector.extract_strided_slice %43 {offsets = [0, 56], sizes = [8, 8], strides = [1, 1]} : vector<8x96xf32> to vector<8x8xf32>
    %102 = vector.extract_strided_slice %43 {offsets = [0, 88], sizes = [8, 8], strides = [1, 1]} : vector<8x96xf32> to vector<8x8xf32>
    %cst_41 = arith.constant dense<0.000000e+00> : vector<8x8xf32>
    %103 = tpu.matmul %100, %101, %cst_41 {dimension_numbers = #tpu.dot_dimension_numbers<[1], [1], [0], [0], [0, 0, 1, 0], [], []>} : vector<8x8xf32>, vector<8x8xf32>, vector<8x8xf32> -> vector<8x8xf32>
    %cst_42 = arith.constant dense<0xFF800000> : vector<8xf32>
    %104 = vector.multi_reduction <maximumf>, %103, %cst_42 [1] : vector<8x8xf32> to vector<8xf32>
    %105 = vector.shape_cast %104 : vector<8xf32> to vector<8x1xf32>
    %106 = vector.broadcast %105 : vector<8x1xf32> to vector<8x8xf32>
    %107 = arith.subf %103, %106 : vector<8x8xf32>
    %108 = math.exp %107 : vector<8x8xf32>
    %cst_43 = arith.constant dense<0.000000e+00> : vector<8xf32>
    %109 = vector.multi_reduction <add>, %108, %cst_43 [1] : vector<8x8xf32> to vector<8xf32>
    %110 = vector.shape_cast %109 : vector<8xf32> to vector<8x1xf32>
    %111 = tpu.reciprocal %110 {approx = true} : vector<8x1xf32> -> vector<8x1xf32>
    %112 = vector.broadcast %111 : vector<8x1xf32> to vector<8x8xf32>
    %113 = arith.mulf %108, %112 : vector<8x8xf32>
    %cst_44 = arith.constant dense<0.000000e+00> : vector<8x8xf32>
    %114 = tpu.matmul %113, %102, %cst_44 {dimension_numbers = #tpu.dot_dimension_numbers<[1], [0], [0], [1], [0, 0, 1, 1], [], []>} : vector<8x8xf32>, vector<8x8xf32>, vector<8x8xf32> -> vector<8x8xf32>
    %115 = vector.extract_strided_slice %16 {offsets = [24, 0], sizes = [8, 32], strides = [1, 1]} : vector<32x32xf32> to vector<8x32xf32>
    %cst_45 = arith.constant dense<0.000000e+00> : vector<8x32xf32>
    %116 = tpu.matmul %114, %115, %cst_45 {dimension_numbers = #tpu.dot_dimension_numbers<[1], [0], [0], [1], [0, 0, 1, 1], [], []>} : vector<8x8xf32>, vector<8x32xf32>, vector<8x32xf32> -> vector<8x32xf32>
    %117 = arith.addf %99, %116 : vector<8x32xf32>
    %cst_46 = arith.constant dense<0.000000e+00> : vector<8xf32>
    %118 = vector.multi_reduction <add>, %117, %cst_46 [1] : vector<8x32xf32> to vector<8xf32>
    %119 = vector.shape_cast %118 : vector<8xf32> to vector<8x1xf32>
    %cst_47 = arith.constant 3.200000e+01 : f32
    %120 = vector.broadcast %cst_47 : f32 to vector<8x1xf32>
    %121 = arith.divf %119, %120 : vector<8x1xf32>
    %122 = vector.broadcast %121 : vector<8x1xf32> to vector<8x32xf32>
    %123 = arith.subf %117, %122 : vector<8x32xf32>
    %124 = arith.mulf %123, %123 : vector<8x32xf32>
    %cst_48 = arith.constant dense<0.000000e+00> : vector<8xf32>
    %125 = vector.multi_reduction <add>, %124, %cst_48 [1] : vector<8x32xf32> to vector<8xf32>
    %126 = vector.shape_cast %125 : vector<8xf32> to vector<8x1xf32>
    %cst_49 = arith.constant 3.200000e+01 : f32
    %127 = vector.broadcast %cst_49 : f32 to vector<8x1xf32>
    %128 = arith.divf %126, %127 : vector<8x1xf32>
    %cst_50 = arith.constant 9.99999974E-6 : f32
    %129 = vector.broadcast %cst_50 : f32 to vector<8x1xf32>
    %130 = arith.addf %128, %129 : vector<8x1xf32>
    %131 = math.rsqrt %130 : vector<8x1xf32>
    %132 = vector.broadcast %131 : vector<8x1xf32> to vector<8x32xf32>
    %133 = arith.mulf %123, %132 : vector<8x32xf32>
    %134 = vector.broadcast %8 : vector<1x32xf32> to vector<8x32xf32>
    %135 = arith.mulf %133, %134 : vector<8x32xf32>
    %136 = vector.broadcast %9 : vector<1x32xf32> to vector<8x32xf32>
    %137 = arith.addf %135, %136 : vector<8x32xf32>
    %cst_51 = arith.constant dense<0.000000e+00> : vector<8x64xf32>
    %138 = tpu.matmul %137, %18, %cst_51 {dimension_numbers = #tpu.dot_dimension_numbers<[1], [0], [0], [1], [0, 0, 1, 1], [], []>} : vector<8x32xf32>, vector<32x64xf32>, vector<8x64xf32> -> vector<8x64xf32>
    %139 = vector.broadcast %12 : vector<1x64xf32> to vector<8x64xf32>
    %140 = arith.addf %138, %139 : vector<8x64xf32>
    %cst_52 = arith.constant 5.000000e-01 : f32
    %141 = vector.broadcast %cst_52 : f32 to vector<8x64xf32>
    %142 = arith.mulf %141, %140 : vector<8x64xf32>
    %cst_53 = arith.constant 0.707106769 : f32
    %143 = vector.broadcast %cst_53 : f32 to vector<8x64xf32>
    %144 = arith.mulf %140, %143 : vector<8x64xf32>
    %145 = math.erf %144 : vector<8x64xf32>
    %cst_54 = arith.constant 1.000000e+00 : f32
    %146 = vector.broadcast %cst_54 : f32 to vector<8x64xf32>
    %147 = arith.addf %146, %145 : vector<8x64xf32>
    %148 = arith.mulf %142, %147 : vector<8x64xf32>
    %cst_55 = arith.constant dense<0.000000e+00> : vector<8x32xf32>
    %149 = tpu.matmul %148, %20, %cst_55 {dimension_numbers = #tpu.dot_dimension_numbers<[1], [0], [0], [1], [0, 0, 1, 1], [], []>} : vector<8x64xf32>, vector<64x32xf32>, vector<8x32xf32> -> vector<8x32xf32>
    %150 = vector.broadcast %10 : vector<1x32xf32> to vector<8x32xf32>
    %151 = arith.addf %149, %150 : vector<8x32xf32>
    %152 = arith.addf %151, %117 : vector<8x32xf32>
    %c0_56 = arith.constant 0 : index
    %c0_57 = arith.constant 0 : index
    %c0_58 = arith.constant 0 : index
    %153 = vector.load %arg10[%c0_56, %c0_57, %c0_58] : memref<2x8x32xf32, #tpu.memory_space<vmem>>, vector<1x8x32xf32>
    %154 = vector.shape_cast %153 : vector<1x8x32xf32> to vector<8x32xf32>
    %155 = vector.shape_cast %152 : vector<8x32xf32> to vector<1x8x32xf32>
    tpu.vector_store %arg10[%c0_56, %c0_57, %c0_58], %155 {strides = array<i32>} : memref<2x8x32xf32, #tpu.memory_space<vmem>>, vector<1x8x32xf32>,
    %c1 = arith.constant 1 : index
    %c0_59 = arith.constant 0 : index
    %c0_60 = arith.constant 0 : index
    %156 = vector.load %arg10[%c1, %c0_59, %c0_60] : memref<2x8x32xf32, #tpu.memory_space<vmem>>, vector<1x8x32xf32>
    %157 = vector.shape_cast %156 : vector<1x8x32xf32> to vector<8x32xf32>
    %cst_61 = arith.constant dense<0.000000e+00> : vector<8xf32>
    %158 = vector.multi_reduction <add>, %157, %cst_61 [1] : vector<8x32xf32> to vector<8xf32>
    %159 = vector.shape_cast %158 : vector<8xf32> to vector<8x1xf32>
    %cst_62 = arith.constant 3.200000e+01 : f32
    %160 = vector.broadcast %cst_62 : f32 to vector<8x1xf32>
    %161 = arith.divf %159, %160 : vector<8x1xf32>
    %162 = vector.broadcast %161 : vector<8x1xf32> to vector<8x32xf32>
    %163 = arith.subf %157, %162 : vector<8x32xf32>
    %164 = arith.mulf %163, %163 : vector<8x32xf32>
    %cst_63 = arith.constant dense<0.000000e+00> : vector<8xf32>
    %165 = vector.multi_reduction <add>, %164, %cst_63 [1] : vector<8x32xf32> to vector<8xf32>
    %166 = vector.shape_cast %165 : vector<8xf32> to vector<8x1xf32>
    %cst_64 = arith.constant 3.200000e+01 : f32
    %167 = vector.broadcast %cst_64 : f32 to vector<8x1xf32>
    %168 = arith.divf %166, %167 : vector<8x1xf32>
    %cst_65 = arith.constant 9.99999974E-6 : f32
    %169 = vector.broadcast %cst_65 : f32 to vector<8x1xf32>
    %170 = arith.addf %168, %169 : vector<8x1xf32>
    %171 = math.rsqrt %170 : vector<8x1xf32>
    %172 = vector.broadcast %171 : vector<8x1xf32> to vector<8x32xf32>
    %173 = arith.mulf %163, %172 : vector<8x32xf32>
    %174 = vector.broadcast %5 : vector<1x32xf32> to vector<8x32xf32>
    %175 = arith.mulf %173, %174 : vector<8x32xf32>
    %176 = vector.broadcast %6 : vector<1x32xf32> to vector<8x32xf32>
    %177 = arith.addf %175, %176 : vector<8x32xf32>
    %cst_66 = arith.constant dense<0.000000e+00> : vector<8x96xf32>
    %178 = tpu.matmul %177, %14, %cst_66 {dimension_numbers = #tpu.dot_dimension_numbers<[1], [0], [0], [1], [0, 0, 1, 1], [], []>} : vector<8x32xf32>, vector<32x96xf32>, vector<8x96xf32> -> vector<8x96xf32>
    %179 = vector.broadcast %7 : vector<1x32xf32> to vector<8x32xf32>
    %180 = arith.addf %157, %179 : vector<8x32xf32>
    %181 = vector.extract_strided_slice %178 {offsets = [0, 0], sizes = [8, 8], strides = [1, 1]} : vector<8x96xf32> to vector<8x8xf32>
    %182 = vector.extract_strided_slice %178 {offsets = [0, 32], sizes = [8, 8], strides = [1, 1]} : vector<8x96xf32> to vector<8x8xf32>
    %183 = vector.extract_strided_slice %178 {offsets = [0, 64], sizes = [8, 8], strides = [1, 1]} : vector<8x96xf32> to vector<8x8xf32>
    %cst_67 = arith.constant dense<0.000000e+00> : vector<8x8xf32>
    %184 = tpu.matmul %181, %182, %cst_67 {dimension_numbers = #tpu.dot_dimension_numbers<[1], [1], [0], [0], [0, 0, 1, 0], [], []>} : vector<8x8xf32>, vector<8x8xf32>, vector<8x8xf32> -> vector<8x8xf32>
    %cst_68 = arith.constant dense<0xFF800000> : vector<8xf32>
    %185 = vector.multi_reduction <maximumf>, %184, %cst_68 [1] : vector<8x8xf32> to vector<8xf32>
    %186 = vector.shape_cast %185 : vector<8xf32> to vector<8x1xf32>
    %187 = vector.broadcast %186 : vector<8x1xf32> to vector<8x8xf32>
    %188 = arith.subf %184, %187 : vector<8x8xf32>
    %189 = math.exp %188 : vector<8x8xf32>
    %cst_69 = arith.constant dense<0.000000e+00> : vector<8xf32>
    %190 = vector.multi_reduction <add>, %189, %cst_69 [1] : vector<8x8xf32> to vector<8xf32>
    %191 = vector.shape_cast %190 : vector<8xf32> to vector<8x1xf32>
    %192 = tpu.reciprocal %191 {approx = true} : vector<8x1xf32> -> vector<8x1xf32>
    %193 = vector.broadcast %192 : vector<8x1xf32> to vector<8x8xf32>
    %194 = arith.mulf %189, %193 : vector<8x8xf32>
    %cst_70 = arith.constant dense<0.000000e+00> : vector<8x8xf32>
    %195 = tpu.matmul %194, %183, %cst_70 {dimension_numbers = #tpu.dot_dimension_numbers<[1], [0], [0], [1], [0, 0, 1, 1], [], []>} : vector<8x8xf32>, vector<8x8xf32>, vector<8x8xf32> -> vector<8x8xf32>
    %196 = vector.extract_strided_slice %16 {offsets = [0, 0], sizes = [8, 32], strides = [1, 1]} : vector<32x32xf32> to vector<8x32xf32>
    %cst_71 = arith.constant dense<0.000000e+00> : vector<8x32xf32>
    %197 = tpu.matmul %195, %196, %cst_71 {dimension_numbers = #tpu.dot_dimension_numbers<[1], [0], [0], [1], [0, 0, 1, 1], [], []>} : vector<8x8xf32>, vector<8x32xf32>, vector<8x32xf32> -> vector<8x32xf32>
    %198 = arith.addf %180, %197 : vector<8x32xf32>
    %199 = vector.extract_strided_slice %178 {offsets = [0, 8], sizes = [8, 8], strides = [1, 1]} : vector<8x96xf32> to vector<8x8xf32>
    %200 = vector.extract_strided_slice %178 {offsets = [0, 40], sizes = [8, 8], strides = [1, 1]} : vector<8x96xf32> to vector<8x8xf32>
    %201 = vector.extract_strided_slice %178 {offsets = [0, 72], sizes = [8, 8], strides = [1, 1]} : vector<8x96xf32> to vector<8x8xf32>
    %cst_72 = arith.constant dense<0.000000e+00> : vector<8x8xf32>
    %202 = tpu.matmul %199, %200, %cst_72 {dimension_numbers = #tpu.dot_dimension_numbers<[1], [1], [0], [0], [0, 0, 1, 0], [], []>} : vector<8x8xf32>, vector<8x8xf32>, vector<8x8xf32> -> vector<8x8xf32>
    %cst_73 = arith.constant dense<0xFF800000> : vector<8xf32>
    %203 = vector.multi_reduction <maximumf>, %202, %cst_73 [1] : vector<8x8xf32> to vector<8xf32>
    %204 = vector.shape_cast %203 : vector<8xf32> to vector<8x1xf32>
    %205 = vector.broadcast %204 : vector<8x1xf32> to vector<8x8xf32>
    %206 = arith.subf %202, %205 : vector<8x8xf32>
    %207 = math.exp %206 : vector<8x8xf32>
    %cst_74 = arith.constant dense<0.000000e+00> : vector<8xf32>
    %208 = vector.multi_reduction <add>, %207, %cst_74 [1] : vector<8x8xf32> to vector<8xf32>
    %209 = vector.shape_cast %208 : vector<8xf32> to vector<8x1xf32>
    %210 = tpu.reciprocal %209 {approx = true} : vector<8x1xf32> -> vector<8x1xf32>
    %211 = vector.broadcast %210 : vector<8x1xf32> to vector<8x8xf32>
    %212 = arith.mulf %207, %211 : vector<8x8xf32>
    %cst_75 = arith.constant dense<0.000000e+00> : vector<8x8xf32>
    %213 = tpu.matmul %212, %201, %cst_75 {dimension_numbers = #tpu.dot_dimension_numbers<[1], [0], [0], [1], [0, 0, 1, 1], [], []>} : vector<8x8xf32>, vector<8x8xf32>, vector<8x8xf32> -> vector<8x8xf32>
    %214 = vector.extract_strided_slice %16 {offsets = [8, 0], sizes = [8, 32], strides = [1, 1]} : vector<32x32xf32> to vector<8x32xf32>
    %cst_76 = arith.constant dense<0.000000e+00> : vector<8x32xf32>
    %215 = tpu.matmul %213, %214, %cst_76 {dimension_numbers = #tpu.dot_dimension_numbers<[1], [0], [0], [1], [0, 0, 1, 1], [], []>} : vector<8x8xf32>, vector<8x32xf32>, vector<8x32xf32> -> vector<8x32xf32>
    %216 = arith.addf %198, %215 : vector<8x32xf32>
    %217 = vector.extract_strided_slice %178 {offsets = [0, 16], sizes = [8, 8], strides = [1, 1]} : vector<8x96xf32> to vector<8x8xf32>
    %218 = vector.extract_strided_slice %178 {offsets = [0, 48], sizes = [8, 8], strides = [1, 1]} : vector<8x96xf32> to vector<8x8xf32>
    %219 = vector.extract_strided_slice %178 {offsets = [0, 80], sizes = [8, 8], strides = [1, 1]} : vector<8x96xf32> to vector<8x8xf32>
    %cst_77 = arith.constant dense<0.000000e+00> : vector<8x8xf32>
    %220 = tpu.matmul %217, %218, %cst_77 {dimension_numbers = #tpu.dot_dimension_numbers<[1], [1], [0], [0], [0, 0, 1, 0], [], []>} : vector<8x8xf32>, vector<8x8xf32>, vector<8x8xf32> -> vector<8x8xf32>
    %cst_78 = arith.constant dense<0xFF800000> : vector<8xf32>
    %221 = vector.multi_reduction <maximumf>, %220, %cst_78 [1] : vector<8x8xf32> to vector<8xf32>
    %222 = vector.shape_cast %221 : vector<8xf32> to vector<8x1xf32>
    %223 = vector.broadcast %222 : vector<8x1xf32> to vector<8x8xf32>
    %224 = arith.subf %220, %223 : vector<8x8xf32>
    %225 = math.exp %224 : vector<8x8xf32>
    %cst_79 = arith.constant dense<0.000000e+00> : vector<8xf32>
    %226 = vector.multi_reduction <add>, %225, %cst_79 [1] : vector<8x8xf32> to vector<8xf32>
    %227 = vector.shape_cast %226 : vector<8xf32> to vector<8x1xf32>
    %228 = tpu.reciprocal %227 {approx = true} : vector<8x1xf32> -> vector<8x1xf32>
    %229 = vector.broadcast %228 : vector<8x1xf32> to vector<8x8xf32>
    %230 = arith.mulf %225, %229 : vector<8x8xf32>
    %cst_80 = arith.constant dense<0.000000e+00> : vector<8x8xf32>
    %231 = tpu.matmul %230, %219, %cst_80 {dimension_numbers = #tpu.dot_dimension_numbers<[1], [0], [0], [1], [0, 0, 1, 1], [], []>} : vector<8x8xf32>, vector<8x8xf32>, vector<8x8xf32> -> vector<8x8xf32>
    %232 = vector.extract_strided_slice %16 {offsets = [16, 0], sizes = [8, 32], strides = [1, 1]} : vector<32x32xf32> to vector<8x32xf32>
    %cst_81 = arith.constant dense<0.000000e+00> : vector<8x32xf32>
    %233 = tpu.matmul %231, %232, %cst_81 {dimension_numbers = #tpu.dot_dimension_numbers<[1], [0], [0], [1], [0, 0, 1, 1], [], []>} : vector<8x8xf32>, vector<8x32xf32>, vector<8x32xf32> -> vector<8x32xf32>
    %234 = arith.addf %216, %233 : vector<8x32xf32>
    %235 = vector.extract_strided_slice %178 {offsets = [0, 24], sizes = [8, 8], strides = [1, 1]} : vector<8x96xf32> to vector<8x8xf32>
    %236 = vector.extract_strided_slice %178 {offsets = [0, 56], sizes = [8, 8], strides = [1, 1]} : vector<8x96xf32> to vector<8x8xf32>
    %237 = vector.extract_strided_slice %178 {offsets = [0, 88], sizes = [8, 8], strides = [1, 1]} : vector<8x96xf32> to vector<8x8xf32>
    %cst_82 = arith.constant dense<0.000000e+00> : vector<8x8xf32>
    %238 = tpu.matmul %235, %236, %cst_82 {dimension_numbers = #tpu.dot_dimension_numbers<[1], [1], [0], [0], [0, 0, 1, 0], [], []>} : vector<8x8xf32>, vector<8x8xf32>, vector<8x8xf32> -> vector<8x8xf32>
    %cst_83 = arith.constant dense<0xFF800000> : vector<8xf32>
    %239 = vector.multi_reduction <maximumf>, %238, %cst_83 [1] : vector<8x8xf32> to vector<8xf32>
    %240 = vector.shape_cast %239 : vector<8xf32> to vector<8x1xf32>
    %241 = vector.broadcast %240 : vector<8x1xf32> to vector<8x8xf32>
    %242 = arith.subf %238, %241 : vector<8x8xf32>
    %243 = math.exp %242 : vector<8x8xf32>
    %cst_84 = arith.constant dense<0.000000e+00> : vector<8xf32>
    %244 = vector.multi_reduction <add>, %243, %cst_84 [1] : vector<8x8xf32> to vector<8xf32>
    %245 = vector.shape_cast %244 : vector<8xf32> to vector<8x1xf32>
    %246 = tpu.reciprocal %245 {approx = true} : vector<8x1xf32> -> vector<8x1xf32>
    %247 = vector.broadcast %246 : vector<8x1xf32> to vector<8x8xf32>
    %248 = arith.mulf %243, %247 : vector<8x8xf32>
    %cst_85 = arith.constant dense<0.000000e+00> : vector<8x8xf32>
    %249 = tpu.matmul %248, %237, %cst_85 {dimension_numbers = #tpu.dot_dimension_numbers<[1], [0], [0], [1], [0, 0, 1, 1], [], []>} : vector<8x8xf32>, vector<8x8xf32>, vector<8x8xf32> -> vector<8x8xf32>
    %250 = vector.extract_strided_slice %16 {offsets = [24, 0], sizes = [8, 32], strides = [1, 1]} : vector<32x32xf32> to vector<8x32xf32>
    %cst_86 = arith.constant dense<0.000000e+00> : vector<8x32xf32>
    %251 = tpu.matmul %249, %250, %cst_86 {dimension_numbers = #tpu.dot_dimension_numbers<[1], [0], [0], [1], [0, 0, 1, 1], [], []>} : vector<8x8xf32>, vector<8x32xf32>, vector<8x32xf32> -> vector<8x32xf32>
    %252 = arith.addf %234, %251 : vector<8x32xf32>
    %cst_87 = arith.constant dense<0.000000e+00> : vector<8xf32>
    %253 = vector.multi_reduction <add>, %252, %cst_87 [1] : vector<8x32xf32> to vector<8xf32>
    %254 = vector.shape_cast %253 : vector<8xf32> to vector<8x1xf32>
    %cst_88 = arith.constant 3.200000e+01 : f32
    %255 = vector.broadcast %cst_88 : f32 to vector<8x1xf32>
    %256 = arith.divf %254, %255 : vector<8x1xf32>
    %257 = vector.broadcast %256 : vector<8x1xf32> to vector<8x32xf32>
    %258 = arith.subf %252, %257 : vector<8x32xf32>
    %259 = arith.mulf %258, %258 : vector<8x32xf32>
    %cst_89 = arith.constant dense<0.000000e+00> : vector<8xf32>
    %260 = vector.multi_reduction <add>, %259, %cst_89 [1] : vector<8x32xf32> to vector<8xf32>
    %261 = vector.shape_cast %260 : vector<8xf32> to vector<8x1xf32>
    %cst_90 = arith.constant 3.200000e+01 : f32
    %262 = vector.broadcast %cst_90 : f32 to vector<8x1xf32>
    %263 = arith.divf %261, %262 : vector<8x1xf32>
    %cst_91 = arith.constant 9.99999974E-6 : f32
    %264 = vector.broadcast %cst_91 : f32 to vector<8x1xf32>
    %265 = arith.addf %263, %264 : vector<8x1xf32>
    %266 = math.rsqrt %265 : vector<8x1xf32>
    %267 = vector.broadcast %266 : vector<8x1xf32> to vector<8x32xf32>
    %268 = arith.mulf %258, %267 : vector<8x32xf32>
    %269 = vector.broadcast %8 : vector<1x32xf32> to vector<8x32xf32>
    %270 = arith.mulf %268, %269 : vector<8x32xf32>
    %271 = vector.broadcast %9 : vector<1x32xf32> to vector<8x32xf32>
    %272 = arith.addf %270, %271 : vector<8x32xf32>
    %cst_92 = arith.constant dense<0.000000e+00> : vector<8x64xf32>
    %273 = tpu.matmul %272, %18, %cst_92 {dimension_numbers = #tpu.dot_dimension_numbers<[1], [0], [0], [1], [0, 0, 1, 1], [], []>} : vector<8x32xf32>, vector<32x64xf32>, vector<8x64xf32> -> vector<8x64xf32>
    %274 = vector.broadcast %12 : vector<1x64xf32> to vector<8x64xf32>
    %275 = arith.addf %273, %274 : vector<8x64xf32>
    %cst_93 = arith.constant 5.000000e-01 : f32
    %276 = vector.broadcast %cst_93 : f32 to vector<8x64xf32>
    %277 = arith.mulf %276, %275 : vector<8x64xf32>
    %cst_94 = arith.constant 0.707106769 : f32
    %278 = vector.broadcast %cst_94 : f32 to vector<8x64xf32>
    %279 = arith.mulf %275, %278 : vector<8x64xf32>
    %280 = math.erf %279 : vector<8x64xf32>
    %cst_95 = arith.constant 1.000000e+00 : f32
    %281 = vector.broadcast %cst_95 : f32 to vector<8x64xf32>
    %282 = arith.addf %281, %280 : vector<8x64xf32>
    %283 = arith.mulf %277, %282 : vector<8x64xf32>
    %cst_96 = arith.constant dense<0.000000e+00> : vector<8x32xf32>
    %284 = tpu.matmul %283, %20, %cst_96 {dimension_numbers = #tpu.dot_dimension_numbers<[1], [0], [0], [1], [0, 0, 1, 1], [], []>} : vector<8x64xf32>, vector<64x32xf32>, vector<8x32xf32> -> vector<8x32xf32>
    %285 = vector.broadcast %10 : vector<1x32xf32> to vector<8x32xf32>
    %286 = arith.addf %284, %285 : vector<8x32xf32>
    %287 = arith.addf %286, %252 : vector<8x32xf32>
    %c1_97 = arith.constant 1 : index
    %c0_98 = arith.constant 0 : index
    %c0_99 = arith.constant 0 : index
    %288 = vector.load %arg10[%c1_97, %c0_98, %c0_99] : memref<2x8x32xf32, #tpu.memory_space<vmem>>, vector<1x8x32xf32>
    %289 = vector.shape_cast %288 : vector<1x8x32xf32> to vector<8x32xf32>
    %290 = vector.shape_cast %287 : vector<8x32xf32> to vector<1x8x32xf32>
    tpu.vector_store %arg10[%c1_97, %c0_98, %c0_99], %290 {strides = array<i32>} : memref<2x8x32xf32, #tpu.memory_space<vmem>>, vector<1x8x32xf32>,
    %c1_i32 = arith.constant 1 : i32
    %291 = arith.cmpi eq, %arg1, %c1_i32 : i32
    %292 = arith.extui %291 : i1 to i32
    %c0_i32_100 = arith.constant 0 : i32
    %293 = arith.cmpi ne, %292, %c0_i32_100 : i32
    scf.if %293 {
      %c0_101 = arith.constant 0 : index
      %c0_102 = arith.constant 0 : index
      %c0_103 = arith.constant 0 : index
      %294 = vector.load %arg10[%c0_101, %c0_102, %c0_103] : memref<2x8x32xf32, #tpu.memory_space<vmem>>, vector<2x8x32xf32>
      %c0_104 = arith.constant 0 : index
      %c0_105 = arith.constant 0 : index
      %c0_106 = arith.constant 0 : index
      %295 = vector.load %arg9[%c0_104, %c0_105, %c0_106] : memref<2x8x32xf32, #tpu.memory_space<vmem>>, vector<2x8x32xf32>
      tpu.vector_store %arg9[%c0_104, %c0_105, %c0_106], %294 {strides = array<i32>} : memref<2x8x32xf32, #tpu.memory_space<vmem>>, vector<2x8x32xf32>,
    } else {
    }
    return
  }
  func.func @transform_0(%arg0: i32, %arg1: i32) -> (i32, i32, i32) {
    %c0_i32 = arith.constant 0 : i32
    %c0_i32_0 = arith.constant 0 : i32
    %c0_i32_1 = arith.constant 0 : i32
    return %arg0, %c0_i32, %c0_i32_0 : i32, i32, i32
  }
  func.func @transform_1(%arg0: i32, %arg1: i32) -> (i32, i32, i32) {
    %c0_i32 = arith.constant 0 : i32
    %c0_i32_0 = arith.constant 0 : i32
    %c0_i32_1 = arith.constant 0 : i32
    return %arg1, %c0_i32, %c0_i32_0 : i32, i32, i32
  }
  func.func @transform_2(%arg0: i32, %arg1: i32) -> (i32, i32, i32) {
    %c0_i32 = arith.constant 0 : i32
    %c0_i32_0 = arith.constant 0 : i32
    %c0_i32_1 = arith.constant 0 : i32
    return %arg1, %c0_i32, %c0_i32_0 : i32, i32, i32
  }
  func.func @transform_3(%arg0: i32, %arg1: i32) -> (i32, i32, i32) {
    %c0_i32 = arith.constant 0 : i32
    %c0_i32_0 = arith.constant 0 : i32
    %c0_i32_1 = arith.constant 0 : i32
    return %arg1, %c0_i32, %c0_i32_0 : i32, i32, i32
  }
  func.func @transform_4(%arg0: i32, %arg1: i32) -> (i32, i32, i32) {
    %c0_i32 = arith.constant 0 : i32
    %c0_i32_0 = arith.constant 0 : i32
    %c0_i32_1 = arith.constant 0 : i32
    return %arg1, %c0_i32, %c0_i32_0 : i32, i32, i32
  }
  func.func @transform_5(%arg0: i32, %arg1: i32) -> (i32, i32, i32) {
    %c0_i32 = arith.constant 0 : i32
    %c0_i32_0 = arith.constant 0 : i32
    %c0_i32_1 = arith.constant 0 : i32
    return %arg1, %c0_i32, %c0_i32_0 : i32, i32, i32
  }
  func.func @transform_6(%arg0: i32, %arg1: i32) -> (i32, i32, i32) {
    %c0_i32 = arith.constant 0 : i32
    %c0_i32_0 = arith.constant 0 : i32
    %c0_i32_1 = arith.constant 0 : i32
    return %arg1, %c0_i32, %c0_i32_0 : i32, i32, i32
  }
  func.func @transform_7(%arg0: i32, %arg1: i32) -> (i32, i32, i32) {
    %c0_i32 = arith.constant 0 : i32
    %c0_i32_0 = arith.constant 0 : i32
    %c0_i32_1 = arith.constant 0 : i32
    return %arg0, %c0_i32, %c0_i32_0 : i32, i32, i32
  }
}

</mosaic_0001>

<llo_original>
// kernel: tpu_custom_call.1
$region0: #{tpu_custom_call.1}
  #allocation0 [shape = 'u32[]', space=smem, size = 0x4, offset = 0x4, fixed_abs, tag = 'smem constant byte address 0x4 - core index']
  #allocation1 [shape = 'u32[72,128]{1,0:T(1,128)}', space=vmem, size = 0x9000, scoped, tag = 'internal scratch']
  #allocation2 [shape = 'f32[2,8,32]{2,1,0:T(8,128)}', space=vmem, size = 0x2000, scoped, tag = 'scratch operand']
  %s0 = inlined_call_operand.vmem [shape: f32[2,8,32], index: 0, kind: input, shape index: {}]
  %s1 = inlined_call_operand.vmem [shape: f32[2,6,32], index: 1, kind: input, shape index: {}]
  %s2 = inlined_call_operand.vmem [shape: f32[2,1,64], index: 2, kind: input, shape index: {}]
  %s3 = inlined_call_operand.vmem [shape: f32[2,32,96], index: 3, kind: input, shape index: {}]
  %s4 = inlined_call_operand.vmem [shape: f32[2,32,32], index: 4, kind: input, shape index: {}]
  %s5 = inlined_call_operand.vmem [shape: f32[2,32,64], index: 5, kind: input, shape index: {}]
  %s6 = inlined_call_operand.vmem [shape: f32[2,64,32], index: 6, kind: input, shape index: {}]
  %s7 = inlined_call_operand.hbm [shape: f32[2,8,32], index: 7, kind: output, shape index: {}]
  %s8 = sld [smem:[#allocation0]]
  $region69: #{tpu_custom_call.1} parent=0
    _
  %s10 = ssub.s32 1, %s8
  %s11 = scalar_select 0, %s10, %s8
  $region1: #{tpu_custom_call.1} parent=0
    #allocation3 [shape = 'u8[8192]{0}', space=vmem, size = 0x2000, scoped, tag = 'output window, operand 0, single buffered']
    #allocation4 [shape = 's32[2]{0}', space=sflag, size = 0x8, scoped, tag = 'scoped memory for tpu_custom_call.1']
    %12 = vsyncpa [#allocation4], 0
    loop: start=0, step=1, limit=4
    $region2: #{tpu_custom_call.1} parent=1 // loop_pre_header
      _
    $region3: #{tpu_custom_call.1} parent=1 // loop_header
      %s14 = sphi 0, %s18
      %p15 = scmp.ge.s32.totalorder %s14, 4
      %s21 = sphi 0, %s33
      %s22 = sphi 0, %s29
      %s23 = sphi 0, %s21
      %s24 = sphi 0, %s22
      %s25 = sphi 0, %s23
      %s26 = sphi 0, %s24
      %s36 = sphi 0, %s38
      %s39 = sphi 0, %s36
      %s40 = sphi 0, %s39
      %s56 = sphi 0, %s40
      %s62 = sphi 0, %s64
      %s65 = sphi 0, %s62
      %s66 = sphi 0, %s65
      %s82 = sphi 0, %s66
      %s88 = sphi 0, %s90
      %s91 = sphi 0, %s88
      %s92 = sphi 0, %s91
      %s108 = sphi 0, %s92
      %s114 = sphi 0, %s116
      %s117 = sphi 0, %s114
      %s118 = sphi 0, %s117
      %s134 = sphi 0, %s118
      %s140 = sphi 0, %s142
      %s143 = sphi 0, %s140
      %s144 = sphi 0, %s143
      %s160 = sphi 0, %s144
      %s166 = sphi 0, %s168
      %s169 = sphi 0, %s166
      %s170 = sphi 0, %s169
      %s186 = sphi 0, %s170
      %s192 = sphi 0, %s194
      %s195 = sphi 0, %s192
      %s196 = sphi 0, %s195
      %s212 = sphi 0, %s196
      %s218 = sphi 0, %s220
      %s221 = sphi 0, %s218
      %s222 = sphi 0, %s221
      %s238 = sphi 0, %s222
    $region4: #{tpu_custom_call.1} parent=1 // loop_header_branch
      %17 = sbr.rel (%p15) target = $region8
    $region5: #{tpu_custom_call.1} parent=1 // loop_body
      %s19 = ssub.s32 %s14, 1
      %s20 = ssub.s32 %s14, 2
      %s27 = sadd.s32 1, %s22
      %p28 = scmp.ge.s32.totalorder %s27, 2
      %s29 = scalar_select %p28, 0, %s27
      %s30 = sadd.s32 1, %s21
      %s31 = scalar_select %p28, %s30, %s21
      %p32 = scmp.ge.s32.totalorder %s31, 1
      %s33 = scalar_select %p32, 0, %s31
      %s34 = ssub.s32 %s21, %s33
      %p35 = scmp.eq.s32.totalorder %s34, 0
      %s37 = sadd.s32 %s36, 1
      %s38 = scalar_select %p35, %s36, %s37
      %p41 = pneg %p35
      %p42 = scmp.eq.s32.totalorder %s14, 1
      %p43 = por %p41, %p42
      %p44 = scmp.ne.s32.totalorder %s36, %s39
      %p45 = scmp.eq.s32.totalorder %s14, 0
      %p46 = por %p44, %p45
      %p47 = scmp.ne.s32.totalorder %s36, %s39
      %p48 = scmp.eq.s32.totalorder %s19, 1
      %p49 = por %p47, %p48
      %p50 = scmp.ne.s32.totalorder %s39, %s40
      %p51 = scmp.eq.s32.totalorder %s19, 0
      %p52 = por %p50, %p51
      %p53 = scmp.ne.s32.totalorder %s39, %s40
      %p54 = scmp.eq.s32.totalorder %s20, 1
      %p55 = por %p53, %p54
      %p57 = scmp.ne.s32.totalorder %s40, %s56
      %p58 = scmp.eq.s32.totalorder %s20, 0
      %p59 = por %p57, %p58
      %s60 = ssub.s32 %s22, %s29
      %p61 = scmp.eq.s32.totalorder %s60, 0
      %s63 = sadd.s32 %s62, 1
      %s64 = scalar_select %p61, %s62, %s63
      %p67 = pneg %p61
      %p68 = scmp.eq.s32.totalorder %s14, 1
      %p69 = por %p67, %p68
      %p70 = scmp.ne.s32.totalorder %s62, %s65
      %p71 = scmp.eq.s32.totalorder %s14, 0
      %p72 = por %p70, %p71
      %p73 = scmp.ne.s32.totalorder %s62, %s65
      %p74 = scmp.eq.s32.totalorder %s19, 1
      %p75 = por %p73, %p74
      %p76 = scmp.ne.s32.totalorder %s65, %s66
      %p77 = scmp.eq.s32.totalorder %s19, 0
      %p78 = por %p76, %p77
      %p79 = scmp.ne.s32.totalorder %s65, %s66
      %p80 = scmp.eq.s32.totalorder %s20, 1
      %p81 = por %p79, %p80
      %p83 = scmp.ne.s32.totalorder %s66, %s82
      %p84 = scmp.eq.s32.totalorder %s20, 0
      %p85 = por %p83, %p84
      %s86 = ssub.s32 %s22, %s29
      %p87 = scmp.eq.s32.totalorder %s86, 0
      %s89 = sadd.s32 %s88, 1
      %s90 = scalar_select %p87, %s88, %s89
      %p93 = pneg %p87
      %p94 = scmp.eq.s32.totalorder %s14, 1
      %p95 = por %p93, %p94
      %p96 = scmp.ne.s32.totalorder %s88, %s91
      %p97 = scmp.eq.s32.totalorder %s14, 0
      %p98 = por %p96, %p97
      %p99 = scmp.ne.s32.totalorder %s88, %s91
      %p100 = scmp.eq.s32.totalorder %s19, 1
      %p101 = por %p99, %p100
      %p102 = scmp.ne.s32.totalorder %s91, %s92
      %p103 = scmp.eq.s32.totalorder %s19, 0
      %p104 = por %p102, %p103
      %p105 = scmp.ne.s32.totalorder %s91, %s92
      %p106 = scmp.eq.s32.totalorder %s20, 1
      %p107 = por %p105, %p106
      %p109 = scmp.ne.s32.totalorder %s92, %s108
      %p110 = scmp.eq.s32.totalorder %s20, 0
      %p111 = por %p109, %p110
      %s112 = ssub.s32 %s22, %s29
      %p113 = scmp.eq.s32.totalorder %s112, 0
      %s115 = sadd.s32 %s114, 1
      %s116 = scalar_select %p113, %s114, %s115
      %p119 = pneg %p113
      %p120 = scmp.eq.s32.totalorder %s14, 1
      %p121 = por %p119, %p120
      %p122 = scmp.ne.s32.totalorder %s114, %s117
      %p123 = scmp.eq.s32.totalorder %s14, 0
      %p124 = por %p122, %p123
      %p125 = scmp.ne.s32.totalorder %s114, %s117
      %p126 = scmp.eq.s32.totalorder %s19, 1
      %p127 = por %p125, %p126
      %p128 = scmp.ne.s32.totalorder %s117, %s118
      %p129 = scmp.eq.s32.totalorder %s19, 0
      %p130 = por %p128, %p129
      %p131 = scmp.ne.s32.totalorder %s117, %s118
      %p132 = scmp.eq.s32.totalorder %s20, 1
      %p133 = por %p131, %p132
      %p135 = scmp.ne.s32.totalorder %s118, %s134
      %p136 = scmp.eq.s32.totalorder %s20, 0
      %p137 = por %p135, %p136
      %s138 = ssub.s32 %s22, %s29
      %p139 = scmp.eq.s32.totalorder %s138, 0
      %s141 = sadd.s32 %s140, 1
      %s142 = scalar_select %p139, %s140, %s141
      %p145 = pneg %p139
      %p146 = scmp.eq.s32.totalorder %s14, 1
      %p147 = por %p145, %p146
      %p148 = scmp.ne.s32.totalorder %s140, %s143
      %p149 = scmp.eq.s32.totalorder %s14, 0
      %p150 = por %p148, %p149
      %p151 = scmp.ne.s32.totalorder %s140, %s143
      %p152 = scmp.eq.s32.totalorder %s19, 1
      %p153 = por %p151, %p152
      %p154 = scmp.ne.s32.totalorder %s143, %s144
      %p155 = scmp.eq.s32.totalorder %s19, 0
      %p156 = por %p154, %p155
      %p157 = scmp.ne.s32.totalorder %s143, %s144
      %p158 = scmp.eq.s32.totalorder %s20, 1
      %p159 = por %p157, %p158
      %p161 = scmp.ne.s32.totalorder %s144, %s160
      %p162 = scmp.eq.s32.totalorder %s20, 0
      %p163 = por %p161, %p162
      %s164 = ssub.s32 %s22, %s29
      %p165 = scmp.eq.s32.totalorder %s164, 0
      %s167 = sadd.s32 %s166, 1
      %s168 = scalar_select %p165, %s166, %s167
      %p171 = pneg %p165
      %p172 = scmp.eq.s32.totalorder %s14, 1
      %p173 = por %p171, %p172
      %p174 = scmp.ne.s32.totalorder %s166, %s169
      %p175 = scmp.eq.s32.totalorder %s14, 0
      %p176 = por %p174, %p175
      %p177 = scmp.ne.s32.totalorder %s166, %s169
      %p178 = scmp.eq.s32.totalorder %s19, 1
      %p179 = por %p177, %p178
      %p180 = scmp.ne.s32.totalorder %s169, %s170
      %p181 = scmp.eq.s32.totalorder %s19, 0
      %p182 = por %p180, %p181
      %p183 = scmp.ne.s32.totalorder %s169, %s170
      %p184 = scmp.eq.s32.totalorder %s20, 1
      %p185 = por %p183, %p184
      %p187 = scmp.ne.s32.totalorder %s170, %s186
      %p188 = scmp.eq.s32.totalorder %s20, 0
      %p189 = por %p187, %p188
      %s190 = ssub.s32 %s22, %s29
      %p191 = scmp.eq.s32.totalorder %s190, 0
      %s193 = sadd.s32 %s192, 1
      %s194 = scalar_select %p191, %s192, %s193
      %p197 = pneg %p191
      %p198 = scmp.eq.s32.totalorder %s14, 1
      %p199 = por %p197, %p198
      %p200 = scmp.ne.s32.totalorder %s192, %s195
      %p201 = scmp.eq.s32.totalorder %s14, 0
      %p202 = por %p200, %p201
      %p203 = scmp.ne.s32.totalorder %s192, %s195
      %p204 = scmp.eq.s32.totalorder %s19, 1
      %p205 = por %p203, %p204
      %p206 = scmp.ne.s32.totalorder %s195, %s196
      %p207 = scmp.eq.s32.totalorder %s19, 0
      %p208 = por %p206, %p207
      %p209 = scmp.ne.s32.totalorder %s195, %s196
      %p210 = scmp.eq.s32.totalorder %s20, 1
      %p211 = por %p209, %p210
      %p213 = scmp.ne.s32.totalorder %s196, %s212
      %p214 = scmp.eq.s32.totalorder %s20, 0
      %p215 = por %p213, %p214
      %s216 = ssub.s32 %s21, %s33
      %p217 = scmp.eq.s32.totalorder %s216, 0
      %s219 = sadd.s32 %s218, 1
      %s220 = scalar_select %p217, %s218, %s219
      %p223 = pneg %p217
      %p224 = scmp.eq.s32.totalorder %s14, 1
      %p225 = por %p223, %p224
      %p226 = scmp.ne.s32.totalorder %s218, %s221
      %p227 = scmp.eq.s32.totalorder %s14, 0
      %p228 = por %p226, %p227
      %p229 = scmp.ne.s32.totalorder %s218, %s221
      %p230 = scmp.eq.s32.totalorder %s19, 1
      %p231 = por %p229, %p230
      %p232 = scmp.ne.s32.totalorder %s221, %s222
      %p233 = scmp.eq.s32.totalorder %s19, 0
      %p234 = por %p232, %p233
      %p235 = scmp.ne.s32.totalorder %s221, %s222
      %p236 = scmp.eq.s32.totalorder %s20, 1
      %p237 = por %p235, %p236
      %p239 = scmp.ne.s32.totalorder %s222, %s238
      %p240 = scmp.eq.s32.totalorder %s20, 0
      %p241 = por %p239, %p240
      %p242 = scmp.le.s32.totalorder 1, %s14
      %p243 = scmp.lt.s32.totalorder %s14, 3
      %p244 = pnand %p242, %p243
      %p245 = pneg %p244
      // Predicated region
      $region9: #{tpu_custom_call.1} parent=5 // pred_check
        _
      $region10: #{tpu_custom_call.1} parent=5 // pred_check_branch
        %247 = sbr.rel (%p244) target = $region12
      $region11: #{tpu_custom_call.1} parent=5 // pred_region
        %s248 = ssub.s32 %s14, 1
        // Predicated region
        $region13: #{tpu_custom_call.1} parent=11 // pred_check
          %p249 = pneg %p52
        $region14: #{tpu_custom_call.1} parent=11 // pred_check_branch
          %251 = sbr.rel (%p249) target = $region16
        $region15: #{tpu_custom_call.1} parent=11 // pred_region
          %s252 = smul.u32 2, %s23
          %p253 = scmp.lt.s32.totalorder %s252, 1
          %s254 = scalar_select %p253, %s252, 1
          %s255 = smul.addr %s254, 8
          %s256 = scalar_lea.vmem %s0, %s255
          %s257 = smul.u32 2, %s23
        $region16: #{tpu_custom_call.1} parent=11 // pred_fallthru
          _
      $region12: #{tpu_custom_call.1} parent=5 // pred_fallthru
        _
      %p258 = scmp.lt.s32.totalorder %s14, 2
      // Predicated region
      $region17: #{tpu_custom_call.1} parent=5 // pred_check
        %p259 = pneg %p258
      $region18: #{tpu_custom_call.1} parent=5 // pred_check_branch
        %261 = sbr.rel (%p259) target = $region20
      $region19: #{tpu_custom_call.1} parent=5 // pred_region
        // Predicated region
        $region21: #{tpu_custom_call.1} parent=19 // pred_check
          %p262 = pneg %p72
        $region22: #{tpu_custom_call.1} parent=19 // pred_check_branch
          %264 = sbr.rel (%p262) target = $region24
        $region23: #{tpu_custom_call.1} parent=19 // pred_region
          %p265 = scmp.lt.s32.totalorder %s22, 1
          %s266 = scalar_select %p265, %s22, 1
          %s267 = smul.addr %s266, 8
          %s268 = scalar_lea.vmem %s1, %s267
        $region24: #{tpu_custom_call.1} parent=19 // pred_fallthru
          _
        // Predicated region
        $region25: #{tpu_custom_call.1} parent=19 // pred_check
          %p269 = pneg %p98
        $region26: #{tpu_custom_call.1} parent=19 // pred_check_branch
          %271 = sbr.rel (%p269) target = $region28
        $region27: #{tpu_custom_call.1} parent=19 // pred_region
          %p272 = scmp.lt.s32.totalorder %s22, 1
          %s273 = scalar_select %p272, %s22, 1
          %s274 = scalar_lea.vmem %s2, %s273
        $region28: #{tpu_custom_call.1} parent=19 // pred_fallthru
          _
        // Predicated region
        $region29: #{tpu_custom_call.1} parent=19 // pred_check
          %p275 = pneg %p124
        $region30: #{tpu_custom_call.1} parent=19 // pred_check_branch
          %277 = sbr.rel (%p275) target = $region32
        $region31: #{tpu_custom_call.1} parent=19 // pred_region
          %p278 = scmp.lt.s32.totalorder %s22, 1
          %s279 = scalar_select %p278, %s22, 1
          %s280 = smul.addr %s279, 4
          %s281 = smul.addr %s280, 8
          %s282 = scalar_lea.vmem %s3, %s281
        $region32: #{tpu_custom_call.1} parent=19 // pred_fallthru
          _
        // Predicated region
        $region33: #{tpu_custom_call.1} parent=19 // pred_check
          %p283 = pneg %p150
        $region34: #{tpu_custom_call.1} parent=19 // pred_check_branch
          %285 = sbr.rel (%p283) target = $region36
        $region35: #{tpu_custom_call.1} parent=19 // pred_region
          %p286 = scmp.lt.s32.totalorder %s22, 1
          %s287 = scalar_select %p286, %s22, 1
          %s288 = smul.addr %s287, 4
          %s289 = smul.addr %s288, 8
          %s290 = scalar_lea.vmem %s4, %s289
        $region36: #{tpu_custom_call.1} parent=19 // pred_fallthru
          _
        // Predicated region
        $region37: #{tpu_custom_call.1} parent=19 // pred_check
          %p291 = pneg %p176
        $region38: #{tpu_custom_call.1} parent=19 // pred_check_branch
          %293 = sbr.rel (%p291) target = $region40
        $region39: #{tpu_custom_call.1} parent=19 // pred_region
          %p294 = scmp.lt.s32.totalorder %s22, 1
          %s295 = scalar_select %p294, %s22, 1
          %s296 = smul.addr %s295, 4
          %s297 = smul.addr %s296, 8
          %s298 = scalar_lea.vmem %s5, %s297
        $region40: #{tpu_custom_call.1} parent=19 // pred_fallthru
          _
        // Predicated region
        $region41: #{tpu_custom_call.1} parent=19 // pred_check
          %p299 = pneg %p202
        $region42: #{tpu_custom_call.1} parent=19 // pred_check_branch
          %301 = sbr.rel (%p299) target = $region44
        $region43: #{tpu_custom_call.1} parent=19 // pred_region
          %p302 = scmp.lt.s32.totalorder %s22, 1
          %s303 = scalar_select %p302, %s22, 1
          %s304 = smul.addr %s303, 8
          %s305 = smul.addr %s304, 8
          %s306 = scalar_lea.vmem %s6, %s305
        $region44: #{tpu_custom_call.1} parent=19 // pred_fallthru
          _
      $region20: #{tpu_custom_call.1} parent=5 // pred_fallthru
        _
      %p307 = scmp.le.s32.totalorder 1, %s14
      %p308 = scmp.lt.s32.totalorder %s14, 3
      %p309 = pnand %p307, %p308
      %p310 = pneg %p309
      // Predicated region
      $region45: #{tpu_custom_call.1} parent=5 // pred_check
        _
      $region46: #{tpu_custom_call.1} parent=5 // pred_check_branch
        %312 = sbr.rel (%p309) target = $region48
      $region47: #{tpu_custom_call.1} parent=5 // pred_region
        %s313 = ssub.s32 %s14, 1
        %s314 = smul.u32 2, %s23
        %p315 = scmp.lt.s32.totalorder %s314, 1
        %s316 = scalar_select %p315, %s314, 1
        %s317 = smul.addr %s316, 8
        %s318 = scalar_lea.vmem %s0, %s317
        %p319 = pneg %p52
        %p320 = pneg %p49
        %p321 = scmp.lt.s32.totalorder %s24, 1
        %s322 = scalar_select %p321, %s24, 1
        %s323 = smul.addr %s322, 8
        %s324 = scalar_lea.vmem %s1, %s323
        %p325 = pneg %p78
        %p326 = pneg %p75
        %p327 = scmp.lt.s32.totalorder %s24, 1
        %s328 = scalar_select %p327, %s24, 1
        %s329 = scalar_lea.vmem %s2, %s328
        %p330 = pneg %p104
        %p331 = pneg %p101
        %p332 = scmp.lt.s32.totalorder %s24, 1
        %s333 = scalar_select %p332, %s24, 1
        %s334 = smul.addr %s333, 4
        %s335 = smul.addr %s334, 8
        %s336 = scalar_lea.vmem %s3, %s335
        %p337 = pneg %p130
        %p338 = pneg %p127
        %p339 = scmp.lt.s32.totalorder %s24, 1
        %s340 = scalar_select %p339, %s24, 1
        %s341 = smul.addr %s340, 4
        %s342 = smul.addr %s341, 8
        %s343 = scalar_lea.vmem %s4, %s342
        %p344 = pneg %p156
        %p345 = pneg %p153
        %p346 = scmp.lt.s32.totalorder %s24, 1
        %s347 = scalar_select %p346, %s24, 1
        %s348 = smul.addr %s347, 4
        %s349 = smul.addr %s348, 8
        %s350 = scalar_lea.vmem %s5, %s349
        %p351 = pneg %p182
        %p352 = pneg %p179
        %p353 = scmp.lt.s32.totalorder %s24, 1
        %s354 = scalar_select %p353, %s24, 1
        %s355 = smul.addr %s354, 8
        %s356 = smul.addr %s355, 8
        %s357 = scalar_lea.vmem %s6, %s356
        %p358 = pneg %p208
        %p359 = pneg %p205
        %p360 = pneg %p234
        %p361 = pneg %p231
        %s362 = smul.u32 2, %s23
        %p363 = scmp.lt.s32.totalorder %s362, 1
        %s364 = scalar_select %p363, %s362, 1
        %s365 = smul.addr %s364, 8
        %s366 = scalar_lea.vmem %s0, %s365
        %s367 = smul.u32 2, %s23
        %p368 = scmp.lt.s32.totalorder %s24, 1
        %s369 = scalar_select %p368, %s24, 1
        %s370 = smul.addr %s369, 8
        %s371 = scalar_lea.vmem %s1, %s370
        %p372 = scmp.lt.s32.totalorder %s24, 1
        %s373 = scalar_select %p372, %s24, 1
        %s374 = scalar_lea.vmem %s2, %s373
        %p375 = scmp.lt.s32.totalorder %s24, 1
        %s376 = scalar_select %p375, %s24, 1
        %s377 = smul.addr %s376, 4
        %s378 = smul.addr %s377, 8
        %s379 = scalar_lea.vmem %s3, %s378
        %p380 = scmp.lt.s32.totalorder %s24, 1
        %s381 = scalar_select %p380, %s24, 1
        %s382 = smul.addr %s381, 4
        %s383 = smul.addr %s382, 8
        %s384 = scalar_lea.vmem %s4, %s383
        %p385 = scmp.lt.s32.totalorder %s24, 1
        %s386 = scalar_select %p385, %s24, 1
        %s387 = smul.addr %s386, 4
        %s388 = smul.addr %s387, 8
        %s389 = scalar_lea.vmem %s5, %s388
        %p390 = scmp.lt.s32.totalorder %s24, 1
        %s391 = scalar_select %p390, %s24, 1
        %s392 = smul.addr %s391, 8
        %s393 = smul.addr %s392, 8
        %s394 = scalar_lea.vmem %s6, %s393
        %s395 = smul.u32 2, %s23
        %p396 = scmp.eq.s32.totalorder %s24, 0
        // Predicated region
        $region49: #{tpu_custom_call.1} parent=47 // pred_check
          %p397 = pneg %p396
        $region50: #{tpu_custom_call.1} parent=47 // pred_check_branch
          %399 = sbr.rel (%p397) target = $region52
        $region51: #{tpu_custom_call.1} parent=47 // pred_region
          %v400 = vld [vmem:[%s366] sm:$0xff]
          %v401 = vld [vmem:[%s366 + $0x8] sm:$0xff]
          %vm402 = vcmask 261120
          %403 = vst.msk [vmem:[#allocation2] sm:$0xff] %vm402, %v400
          %404 = vst.msk [vmem:[#allocation2 + $0x8] sm:$0xff] %vm402, %v401
        $region52: #{tpu_custom_call.1} parent=47 // pred_fallthru
          _
        %v405 = vld [vmem:[%s371] sm:$0x3f]
        %v406 = vld [vmem:[%s374] sm:$0x1]
        %v407 = vld [vmem:[%s379] sm:$0xff]
        %v408 = vld [vmem:[%s379 + $0x8] sm:$0xff]
        %v409 = vld [vmem:[%s379 + $0x10] sm:$0xff]
        %v410 = vld [vmem:[%s379 + $0x18] sm:$0xff]
        %v411 = vld [vmem:[%s384] sm:$0xff]
        %v412 = vld [vmem:[%s384 + $0x8] sm:$0xff]
        %v413 = vld [vmem:[%s384 + $0x10] sm:$0xff]
        %v414 = vld [vmem:[%s384 + $0x18] sm:$0xff]
        %v415 = vld [vmem:[%s389] sm:$0xff]
        %v416 = vld [vmem:[%s389 + $0x8] sm:$0xff]
        %v417 = vld [vmem:[%s389 + $0x10] sm:$0xff]
        %v418 = vld [vmem:[%s389 + $0x18] sm:$0xff]
        %v419 = vld [vmem:[%s394] sm:$0xff]
        %v420 = vld [vmem:[%s394 + $0x8] sm:$0xff]
        %v421 = vld [vmem:[%s394 + $0x10] sm:$0xff]
        %v422 = vld [vmem:[%s394 + $0x18] sm:$0xff]
        %v423 = vld [vmem:[%s394 + $0x20] sm:$0xff]
        %v424 = vld [vmem:[%s394 + $0x28] sm:$0xff]
        %v425 = vld [vmem:[%s394 + $0x30] sm:$0xff]
        %v426 = vld [vmem:[%s394 + $0x38] sm:$0xff]
        %v427 = vld [vmem:[#allocation2] sm:$0xff]
        %vm428 = vcmask 261120
        %v429 = vsel %vm428, %v427, 0.0
        %430 = vadd.xlane.f32.xlu0 %v429
        %v431 = vpop.xlane.xlu0 %430
        %v432 = vrcp.pop 32.0
        %v433 = vmul.f32 32.0, %v432
        %v434 = vsub.f32 1.0, %v433
        %v435 = vmul.f32 %v432, %v434
        %v436 = vadd.f32 %v432, %v435
        %vm437 = vweird.f32 %v432
        %v438 = vsel %vm437, %v432, %v436
        %v439 = vmul.f32 %v431, %v438
        %v440 = vsub.f32 %v427, %v439
        %v441 = vmul.f32 %v440, %v440
        %v442 = vsel %vm428, %v441, 0.0
        %443 = vadd.xlane.f32.xlu0 %v442
        %v444 = vpop.xlane.xlu0 %443
        %v445 = vmul.f32 %v444, %v438
        %v446 = vadd.f32 %v445, 1e-05
        %v447 = vrsqrt.pop %v446
        %v448 = vmul.f32 %v447, %v446
        %v449 = vmul.f32 %v448, %v447
        %v450 = vmul.f32 0.5, %v449
        %v451 = vsub.f32 1.5, %v450
        %v452 = vmul.f32 %v447, %v451
        %vm453 = vweird.f32 %v446
        %vm454 = vweird.f32 %v447
        %vm455 = vmor %vm453, %vm454
        %v456 = vsel %vm455, %v447, %v452
        %v457 = vmul.f32 %v440, %v456
        %v458 = vperm.slane %v405, 0
        %v459 = vmul.f32 %v457, %v458
        %v460 = vperm.slane %v405, 1
        %v461 = vadd.f32 %v459, %v460
        %v463 = vsel %vm428, %v461, 0
        %465 = vmatpush.msra.mxu0 0.0
        %466 = vmatpush.msra.mxu0 0.0
        %467 = vmatpush.msra.mxu0 0.0
        %468 = vmatpush.msra.mxu0 0.0
        %469 = vmatpush.msra.mxu0 0.0
        %470 = vmatpush.msra.mxu0 0.0
        %471 = vmatpush.msra.mxu0 0.0
        %472 = vmatpush.msra.mxu0 0.0
        %473 = vmatpush.msra.mxu0 0.0
        %474 = vmatpush.msra.mxu0 0.0
        %475 = vmatpush.msra.mxu0 0.0
        %476 = vmatpush.msra.mxu0 0.0
        %477 = vmatpush.msra.mxu0 %v410
        %478 = vmatpush.msra.mxu0 %v409
        %479 = vmatpush.msra.mxu0 %v408
        %480 = vmatpush.msra.mxu0 %v407
        %481 = vmatmul.f32.gmra.mxu0 %v463
        %v482 = vpop.f32.mrf.mxu0
        %v483 = vadd.f32 0.0, %v482
        %484 = vdwg.mxu0
        %v485 = vperm.slane %v405, 2
        %v486 = vadd.f32 %v427, %v485
        %488 = vrot.lane.b32.xlu0 %v483, 96
        %v489 = vpop.permute.xlu0 %488
        %vm490 = vcmask 64512
        %v491 = vsel %vm490, %v483, 0
        %v493 = vsel %vm490, %v489, 0
        %495 = vmatpush.xpose.msra.mxu0 0.0
        %496 = vmatpush.xpose.msra.mxu0 0.0
        %497 = vmatpush.xpose.msra.mxu0 0.0
        %498 = vmatpush.xpose.msra.mxu0 0.0
        %499 = vmatpush.xpose.msra.mxu0 0.0
        %500 = vmatpush.xpose.msra.mxu0 0.0
        %501 = vmatpush.xpose.msra.mxu0 0.0
        %502 = vmatpush.xpose.msra.mxu0 0.0
        %503 = vmatpush.xpose.msra.mxu0 0.0
        %504 = vmatpush.xpose.msra.mxu0 0.0
        %505 = vmatpush.xpose.msra.mxu0 0.0
        %506 = vmatpush.xpose.msra.mxu0 0.0
        %507 = vmatpush.xpose.msra.mxu0 0.0
        %508 = vmatpush.xpose.msra.mxu0 0.0
        %509 = vmatpush.xpose.msra.mxu0 0.0
        %510 = vmatpush.xpose.msra.mxu0 %v493
        %511 = vmatmul.f32.gmra.mxu0 %v491
        %v512 = vpop.f32.mrf.mxu0
        %v513 = vadd.f32 0.0, %v512
        %514 = vdwg.mxu0
        %v515 = vsel %vm490, %v513, -inf
        %516 = vmax.xlane.f32.xlu0 %v515
        %v517 = vpop.xlane.xlu0 %516
        %v518 = vsub.f32 %v513, %v517
        %v519 = vmul.f32 %v518, 1.442695
        %v520 = vpow.pop %v519
        %v521 = vsel %vm490, %v520, 0.0
        %522 = vadd.xlane.f32.xlu0 %v521
        %v523 = vpop.xlane.xlu0 %522
        %v524 = vrcp.pop %v523
        %v525 = vmul.f32 %v520, %v524
        %526 = vrot.lane.b32.xlu0 %v483, 64
        %v527 = vpop.permute.xlu0 %526
        %v530 = vsel %vm490, %v525, 0
        %532 = vmatpush.msra.mxu0 0.0
        %533 = vmatpush.msra.mxu0 0.0
        %534 = vmatpush.msra.mxu0 0.0
        %535 = vmatpush.msra.mxu0 0.0
        %536 = vmatpush.msra.mxu0 0.0
        %537 = vmatpush.msra.mxu0 0.0
        %538 = vmatpush.msra.mxu0 0.0
        %539 = vmatpush.msra.mxu0 0.0
        %540 = vmatpush.msra.mxu0 0.0
        %541 = vmatpush.msra.mxu0 0.0
        %542 = vmatpush.msra.mxu0 0.0
        %543 = vmatpush.msra.mxu0 0.0
        %544 = vmatpush.msra.mxu0 0.0
        %545 = vmatpush.msra.mxu0 0.0
        %546 = vmatpush.msra.mxu0 0.0
        %547 = vmatpush.msra.mxu0 %v527
        %548 = vmatmul.f32.gmra.mxu0 %v530
        %v549 = vpop.f32.mrf.mxu0
        %v550 = vadd.f32 0.0, %v549
        %551 = vdwg.mxu0
        %v553 = vsel %vm490, %v550, 0
        %555 = vmatpush.msra.mxu0 0.0
        %556 = vmatpush.msra.mxu0 0.0
        %557 = vmatpush.msra.mxu0 0.0
        %558 = vmatpush.msra.mxu0 0.0
        %559 = vmatpush.msra.mxu0 0.0
        %560 = vmatpush.msra.mxu0 0.0
        %561 = vmatpush.msra.mxu0 0.0
        %562 = vmatpush.msra.mxu0 0.0
        %563 = vmatpush.msra.mxu0 0.0
        %564 = vmatpush.msra.mxu0 0.0
        %565 = vmatpush.msra.mxu0 0.0
        %566 = vmatpush.msra.mxu0 0.0
        %567 = vmatpush.msra.mxu0 0.0
        %568 = vmatpush.msra.mxu0 0.0
        %569 = vmatpush.msra.mxu0 0.0
        %570 = vmatpush.msra.mxu0 %v411
        %571 = vmatmul.f32.gmra.mxu0 %v553
        %v572 = vpop.f32.mrf.mxu0
        %v573 = vadd.f32 0.0, %v572
        %574 = vdwg.mxu0
        %v575 = vadd.f32 %v486, %v573
        %576 = vrot.lane.b32.xlu0 %v483, 120
        %v577 = vpop.permute.xlu0 %576
        %578 = vrot.lane.b32.xlu0 %v483, 88
        %v579 = vpop.permute.xlu0 %578
        %v580 = vsel %vm490, %v577, 0
        %v582 = vsel %vm490, %v579, 0
        %584 = vmatpush.xpose.msra.mxu0 0.0
        %585 = vmatpush.xpose.msra.mxu0 0.0
        %586 = vmatpush.xpose.msra.mxu0 0.0
        %587 = vmatpush.xpose.msra.mxu0 0.0
        %588 = vmatpush.xpose.msra.mxu0 0.0
        %589 = vmatpush.xpose.msra.mxu0 0.0
        %590 = vmatpush.xpose.msra.mxu0 0.0
        %591 = vmatpush.xpose.msra.mxu0 0.0
        %592 = vmatpush.xpose.msra.mxu0 0.0
        %593 = vmatpush.xpose.msra.mxu0 0.0
        %594 = vmatpush.xpose.msra.mxu0 0.0
        %595 = vmatpush.xpose.msra.mxu0 0.0
        %596 = vmatpush.xpose.msra.mxu0 0.0
        %597 = vmatpush.xpose.msra.mxu0 0.0
        %598 = vmatpush.xpose.msra.mxu0 0.0
        %599 = vmatpush.xpose.msra.mxu0 %v582
        %600 = vmatmul.f32.gmra.mxu0 %v580
        %v601 = vpop.f32.mrf.mxu0
        %v602 = vadd.f32 0.0, %v601
        %603 = vdwg.mxu0
        %v604 = vsel %vm490, %v602, -inf
        %605 = vmax.xlane.f32.xlu0 %v604
        %v606 = vpop.xlane.xlu0 %605
        %v607 = vsub.f32 %v602, %v606
        %v608 = vmul.f32 %v607, 1.442695
        %v609 = vpow.pop %v608
        %v610 = vsel %vm490, %v609, 0.0
        %611 = vadd.xlane.f32.xlu0 %v610
        %v612 = vpop.xlane.xlu0 %611
        %v613 = vrcp.pop %v612
        %v614 = vmul.f32 %v609, %v613
        %615 = vrot.lane.b32.xlu0 %v483, 56
        %v616 = vpop.permute.xlu0 %615
        %v619 = vsel %vm490, %v614, 0
        %621 = vmatpush.msra.mxu0 0.0
        %622 = vmatpush.msra.mxu0 0.0
        %623 = vmatpush.msra.mxu0 0.0
        %624 = vmatpush.msra.mxu0 0.0
        %625 = vmatpush.msra.mxu0 0.0
        %626 = vmatpush.msra.mxu0 0.0
        %627 = vmatpush.msra.mxu0 0.0
        %628 = vmatpush.msra.mxu0 0.0
        %629 = vmatpush.msra.mxu0 0.0
        %630 = vmatpush.msra.mxu0 0.0
        %631 = vmatpush.msra.mxu0 0.0
        %632 = vmatpush.msra.mxu0 0.0
        %633 = vmatpush.msra.mxu0 0.0
        %634 = vmatpush.msra.mxu0 0.0
        %635 = vmatpush.msra.mxu0 0.0
        %636 = vmatpush.msra.mxu0 %v616
        %637 = vmatmul.f32.gmra.mxu0 %v619
        %v638 = vpop.f32.mrf.mxu0
        %v639 = vadd.f32 0.0, %v638
        %640 = vdwg.mxu0
        %v642 = vsel %vm490, %v639, 0
        %644 = vmatpush.msra.mxu0 0.0
        %645 = vmatpush.msra.mxu0 0.0
        %646 = vmatpush.msra.mxu0 0.0
        %647 = vmatpush.msra.mxu0 0.0
        %648 = vmatpush.msra.mxu0 0.0
        %649 = vmatpush.msra.mxu0 0.0
        %650 = vmatpush.msra.mxu0 0.0
        %651 = vmatpush.msra.mxu0 0.0
        %652 = vmatpush.msra.mxu0 0.0
        %653 = vmatpush.msra.mxu0 0.0
        %654 = vmatpush.msra.mxu0 0.0
        %655 = vmatpush.msra.mxu0 0.0
        %656 = vmatpush.msra.mxu0 0.0
        %657 = vmatpush.msra.mxu0 0.0
        %658 = vmatpush.msra.mxu0 0.0
        %659 = vmatpush.msra.mxu0 %v412
        %660 = vmatmul.f32.gmra.mxu0 %v642
        %v661 = vpop.f32.mrf.mxu0
        %v662 = vadd.f32 0.0, %v661
        %663 = vdwg.mxu0
        %v664 = vadd.f32 %v575, %v662
        %665 = vrot.lane.b32.xlu0 %v483, 112
        %v666 = vpop.permute.xlu0 %665
        %667 = vrot.lane.b32.xlu0 %v483, 80
        %v668 = vpop.permute.xlu0 %667
        %v669 = vsel %vm490, %v666, 0
        %v671 = vsel %vm490, %v668, 0
        %673 = vmatpush.xpose.msra.mxu0 0.0
        %674 = vmatpush.xpose.msra.mxu0 0.0
        %675 = vmatpush.xpose.msra.mxu0 0.0
        %676 = vmatpush.xpose.msra.mxu0 0.0
        %677 = vmatpush.xpose.msra.mxu0 0.0
        %678 = vmatpush.xpose.msra.mxu0 0.0
        %679 = vmatpush.xpose.msra.mxu0 0.0
        %680 = vmatpush.xpose.msra.mxu0 0.0
        %681 = vmatpush.xpose.msra.mxu0 0.0
        %682 = vmatpush.xpose.msra.mxu0 0.0
        %683 = vmatpush.xpose.msra.mxu0 0.0
        %684 = vmatpush.xpose.msra.mxu0 0.0
        %685 = vmatpush.xpose.msra.mxu0 0.0
        %686 = vmatpush.xpose.msra.mxu0 0.0
        %687 = vmatpush.xpose.msra.mxu0 0.0
        %688 = vmatpush.xpose.msra.mxu0 %v671
        %689 = vmatmul.f32.gmra.mxu0 %v669
        %v690 = vpop.f32.mrf.mxu0
        %v691 = vadd.f32 0.0, %v690
        %692 = vdwg.mxu0
        %v693 = vsel %vm490, %v691, -inf
        %694 = vmax.xlane.f32.xlu0 %v693
        %v695 = vpop.xlane.xlu0 %694
        %v696 = vsub.f32 %v691, %v695
        %v697 = vmul.f32 %v696, 1.442695
        %v698 = vpow.pop %v697
        %v699 = vsel %vm490, %v698, 0.0
        %700 = vadd.xlane.f32.xlu0 %v699
        %v701 = vpop.xlane.xlu0 %700
        %v702 = vrcp.pop %v701
        %v703 = vmul.f32 %v698, %v702
        %704 = vrot.lane.b32.xlu0 %v483, 48
        %v705 = vpop.permute.xlu0 %704
        %v708 = vsel %vm490, %v703, 0
        %710 = vmatpush.msra.mxu0 0.0
        %711 = vmatpush.msra.mxu0 0.0
        %712 = vmatpush.msra.mxu0 0.0
        %713 = vmatpush.msra.mxu0 0.0
        %714 = vmatpush.msra.mxu0 0.0
        %715 = vmatpush.msra.mxu0 0.0
        %716 = vmatpush.msra.mxu0 0.0
        %717 = vmatpush.msra.mxu0 0.0
        %718 = vmatpush.msra.mxu0 0.0
        %719 = vmatpush.msra.mxu0 0.0
        %720 = vmatpush.msra.mxu0 0.0
        %721 = vmatpush.msra.mxu0 0.0
        %722 = vmatpush.msra.mxu0 0.0
        %723 = vmatpush.msra.mxu0 0.0
        %724 = vmatpush.msra.mxu0 0.0
        %725 = vmatpush.msra.mxu0 %v705
        %726 = vmatmul.f32.gmra.mxu0 %v708
        %v727 = vpop.f32.mrf.mxu0
        %v728 = vadd.f32 0.0, %v727
        %729 = vdwg.mxu0
        %v731 = vsel %vm490, %v728, 0
        %733 = vmatpush.msra.mxu0 0.0
        %734 = vmatpush.msra.mxu0 0.0
        %735 = vmatpush.msra.mxu0 0.0
        %736 = vmatpush.msra.mxu0 0.0
        %737 = vmatpush.msra.mxu0 0.0
        %738 = vmatpush.msra.mxu0 0.0
        %739 = vmatpush.msra.mxu0 0.0
        %740 = vmatpush.msra.mxu0 0.0
        %741 = vmatpush.msra.mxu0 0.0
        %742 = vmatpush.msra.mxu0 0.0
        %743 = vmatpush.msra.mxu0 0.0
        %744 = vmatpush.msra.mxu0 0.0
        %745 = vmatpush.msra.mxu0 0.0
        %746 = vmatpush.msra.mxu0 0.0
        %747 = vmatpush.msra.mxu0 0.0
        %748 = vmatpush.msra.mxu0 %v413
        %749 = vmatmul.f32.gmra.mxu0 %v731
        %v750 = vpop.f32.mrf.mxu0
        %v751 = vadd.f32 0.0, %v750
        %752 = vdwg.mxu0
        %v753 = vadd.f32 %v664, %v751
        %754 = vrot.lane.b32.xlu0 %v483, 104
        %v755 = vpop.permute.xlu0 %754
        %756 = vrot.lane.b32.xlu0 %v483, 72
        %v757 = vpop.permute.xlu0 %756
        %v758 = vsel %vm490, %v755, 0
        %v760 = vsel %vm490, %v757, 0
        %762 = vmatpush.xpose.msra.mxu0 0.0
        %763 = vmatpush.xpose.msra.mxu0 0.0
        %764 = vmatpush.xpose.msra.mxu0 0.0
        %765 = vmatpush.xpose.msra.mxu0 0.0
        %766 = vmatpush.xpose.msra.mxu0 0.0
        %767 = vmatpush.xpose.msra.mxu0 0.0
        %768 = vmatpush.xpose.msra.mxu0 0.0
        %769 = vmatpush.xpose.msra.mxu0 0.0
        %770 = vmatpush.xpose.msra.mxu0 0.0
        %771 = vmatpush.xpose.msra.mxu0 0.0
        %772 = vmatpush.xpose.msra.mxu0 0.0
        %773 = vmatpush.xpose.msra.mxu0 0.0
        %774 = vmatpush.xpose.msra.mxu0 0.0
        %775 = vmatpush.xpose.msra.mxu0 0.0
        %776 = vmatpush.xpose.msra.mxu0 0.0
        %777 = vmatpush.xpose.msra.mxu0 %v760
        %778 = vmatmul.f32.gmra.mxu0 %v758
        %v779 = vpop.f32.mrf.mxu0
        %v780 = vadd.f32 0.0, %v779
        %781 = vdwg.mxu0
        %v782 = vsel %vm490, %v780, -inf
        %783 = vmax.xlane.f32.xlu0 %v782
        %v784 = vpop.xlane.xlu0 %783
        %v785 = vsub.f32 %v780, %v784
        %v786 = vmul.f32 %v785, 1.442695
        %v787 = vpow.pop %v786
        %v788 = vsel %vm490, %v787, 0.0
        %789 = vadd.xlane.f32.xlu0 %v788
        %v790 = vpop.xlane.xlu0 %789
        %v791 = vrcp.pop %v790
        %v792 = vmul.f32 %v787, %v791
        %793 = vrot.lane.b32.xlu0 %v483, 40
        %v794 = vpop.permute.xlu0 %793
        %v797 = vsel %vm490, %v792, 0
        %799 = vmatpush.msra.mxu0 0.0
        %800 = vmatpush.msra.mxu0 0.0
        %801 = vmatpush.msra.mxu0 0.0
        %802 = vmatpush.msra.mxu0 0.0
        %803 = vmatpush.msra.mxu0 0.0
        %804 = vmatpush.msra.mxu0 0.0
        %805 = vmatpush.msra.mxu0 0.0
        %806 = vmatpush.msra.mxu0 0.0
        %807 = vmatpush.msra.mxu0 0.0
        %808 = vmatpush.msra.mxu0 0.0
        %809 = vmatpush.msra.mxu0 0.0
        %810 = vmatpush.msra.mxu0 0.0
        %811 = vmatpush.msra.mxu0 0.0
        %812 = vmatpush.msra.mxu0 0.0
        %813 = vmatpush.msra.mxu0 0.0
        %814 = vmatpush.msra.mxu0 %v794
        %815 = vmatmul.f32.gmra.mxu0 %v797
        %v816 = vpop.f32.mrf.mxu0
        %v817 = vadd.f32 0.0, %v816
        %818 = vdwg.mxu0
        %v820 = vsel %vm490, %v817, 0
        %822 = vmatpush.msra.mxu0 0.0
        %823 = vmatpush.msra.mxu0 0.0
        %824 = vmatpush.msra.mxu0 0.0
        %825 = vmatpush.msra.mxu0 0.0
        %826 = vmatpush.msra.mxu0 0.0
        %827 = vmatpush.msra.mxu0 0.0
        %828 = vmatpush.msra.mxu0 0.0
        %829 = vmatpush.msra.mxu0 0.0
        %830 = vmatpush.msra.mxu0 0.0
        %831 = vmatpush.msra.mxu0 0.0
        %832 = vmatpush.msra.mxu0 0.0
        %833 = vmatpush.msra.mxu0 0.0
        %834 = vmatpush.msra.mxu0 0.0
        %835 = vmatpush.msra.mxu0 0.0
        %836 = vmatpush.msra.mxu0 0.0
        %837 = vmatpush.msra.mxu0 %v414
        %838 = vmatmul.f32.gmra.mxu0 %v820
        %v839 = vpop.f32.mrf.mxu0
        %v840 = vadd.f32 0.0, %v839
        %841 = vdwg.mxu0
        %v842 = vadd.f32 %v753, %v840
        %v843 = vsel %vm428, %v842, 0.0
        %844 = vadd.xlane.f32.xlu0 %v843
        %v845 = vpop.xlane.xlu0 %844
        %v846 = vmul.f32 %v845, %v438
        %v847 = vsub.f32 %v842, %v846
        %v848 = vmul.f32 %v847, %v847
        %v849 = vsel %vm428, %v848, 0.0
        %850 = vadd.xlane.f32.xlu0 %v849
        %v851 = vpop.xlane.xlu0 %850
        %v852 = vmul.f32 %v851, %v438
        %v853 = vadd.f32 %v852, 1e-05
        %v854 = vrsqrt.pop %v853
        %v855 = vmul.f32 %v854, %v853
        %v856 = vmul.f32 %v855, %v854
        %v857 = vmul.f32 0.5, %v856
        %v858 = vsub.f32 1.5, %v857
        %v859 = vmul.f32 %v854, %v858
        %vm860 = vweird.f32 %v853
        %vm861 = vweird.f32 %v854
        %vm862 = vmor %vm860, %vm861
        %v863 = vsel %vm862, %v854, %v859
        %v864 = vmul.f32 %v847, %v863
        %v865 = vperm.slane %v405, 3
        %v866 = vmul.f32 %v864, %v865
        %v867 = vperm.slane %v405, 4
        %v868 = vadd.f32 %v866, %v867
        %v870 = vperm.slane %v406, 0
        %v873 = vsel %vm428, %v868, 0
        %875 = vmatpush.msra.mxu0 0.0
        %876 = vmatpush.msra.mxu0 0.0
        %877 = vmatpush.msra.mxu0 0.0
        %878 = vmatpush.msra.mxu0 0.0
        %879 = vmatpush.msra.mxu0 0.0
        %880 = vmatpush.msra.mxu0 0.0
        %881 = vmatpush.msra.mxu0 0.0
        %882 = vmatpush.msra.mxu0 0.0
        %883 = vmatpush.msra.mxu0 0.0
        %884 = vmatpush.msra.mxu0 0.0
        %885 = vmatpush.msra.mxu0 0.0
        %886 = vmatpush.msra.mxu0 0.0
        %887 = vmatpush.msra.mxu0 %v418
        %888 = vmatpush.msra.mxu0 %v417
        %889 = vmatpush.msra.mxu0 %v416
        %890 = vmatpush.msra.mxu0 %v415
        %891 = vmatmul.f32.gmra.mxu0 %v873
        %v892 = vpop.f32.mrf.mxu0
        %v893 = vadd.f32 %v870, %v892
        %894 = vdwg.mxu0
        %v895 = vmul.f32 %v893, 0.5
        %v896 = vmul.f32 %v893, 0.70710677
        %v897 = vmul.f32 %v896, %v896
        %v898 = vmin.f32 16.0, %v897
        %v899 = vmul.f32 %v898, 2.1237322e-06
        %v900 = vadd.f32 %v899, 0.00028619796
        %v901 = vmul.f32 %v898, %v900
        %v902 = vadd.f32 %v901, 0.0036580483
        %v903 = vmul.f32 %v898, %v902
        %v904 = vadd.f32 %v903, 0.05243302
        %v905 = vmul.f32 %v898, %v904
        %v906 = vadd.f32 %v905, 0.18741608
        %v907 = vmul.f32 %v898, %v906
        %v908 = vadd.f32 %v907, 1.1283791
        %v909 = vmul.f32 %v896, %v908
        %v910 = vmul.f32 %v898, 3.8918573e-05
        %v911 = vadd.f32 %v910, 0.001143296
        %v912 = vmul.f32 %v898, %v911
        %v913 = vadd.f32 %v912, 0.014752088
        %v914 = vmul.f32 %v898, %v913
        %v915 = vadd.f32 %v914, 0.112945676
        %v916 = vmul.f32 %v898, %v915
        %v917 = vadd.f32 %v916, 0.4994258
        %v918 = vmul.f32 %v898, %v917
        %v919 = vadd.f32 %v918, 1.0
        %v920 = vrcp.pop %v919
        %v921 = vmul.f32 %v919, %v920
        %v922 = vsub.f32 1.0, %v921
        %v923 = vmul.f32 %v920, %v922
        %v924 = vadd.f32 %v920, %v923
        %vm925 = vweird.f32 %v919
        %vm926 = vweird.f32 %v920
        %vm927 = vmor %vm925, %vm926
        %v928 = vsel %vm927, %v920, %v924
        %v929 = vand.u32 2147483647, %v919
        %vm930 = vcmp.eq.f32.partialorder %v929, 8.507059e+37
        %v931 = vand.u32 %v919, 2147483648
        %v932 = vor.u32 1.1754944e-38, %v931
        %v933 = vsel %vm930, %v932, %v928
        %v934 = vmul.f32 %v909, %v933
        %v935 = vmin.f32 %v934, 1.0
        %v936 = vmax.f32 %v935, -1.0
        %v937 = vadd.f32 %v936, 1.0
        %v938 = vmul.f32 %v895, %v937
        %v939 = vperm.slane %v405, 5
        %vm940 = vcmask 523264
        %v942 = vsel %vm940, %v938, 0
        %944 = vmatpush.msra.mxu0 0.0
        %945 = vmatpush.msra.mxu0 0.0
        %946 = vmatpush.msra.mxu0 0.0
        %947 = vmatpush.msra.mxu0 0.0
        %948 = vmatpush.msra.mxu0 0.0
        %949 = vmatpush.msra.mxu0 0.0
        %950 = vmatpush.msra.mxu0 0.0
        %951 = vmatpush.msra.mxu0 0.0
        %952 = vmatpush.msra.mxu0 %v426
        %953 = vmatpush.msra.mxu0 %v425
        %954 = vmatpush.msra.mxu0 %v424
        %955 = vmatpush.msra.mxu0 %v423
        %956 = vmatpush.msra.mxu0 %v422
        %957 = vmatpush.msra.mxu0 %v421
        %958 = vmatpush.msra.mxu0 %v420
        %959 = vmatpush.msra.mxu0 %v419
        %960 = vmatmul.f32.gmra.mxu0 %v942
        %v961 = vpop.f32.mrf.mxu0
        %v962 = vadd.f32 %v939, %v961
        %963 = vdwg.mxu0
        %v964 = vadd.f32 %v962, %v842
        %965 = vst.msk [vmem:[#allocation2] sm:$0xff] %vm428, %v964
        %s966 = scalar_lea.vmem [#allocation2], 8
        %v967 = vld [vmem:[%s966] sm:$0xff]
        %v968 = vsel %vm428, %v967, 0.0
        %969 = vadd.xlane.f32.xlu0 %v968
        %v970 = vpop.xlane.xlu0 %969
        %v971 = vmul.f32 %v970, %v438
        %v972 = vsub.f32 %v967, %v971
        %v973 = vmul.f32 %v972, %v972
        %v974 = vsel %vm428, %v973, 0.0
        %975 = vadd.xlane.f32.xlu0 %v974
        %v976 = vpop.xlane.xlu0 %975
        %v977 = vmul.f32 %v976, %v438
        %v978 = vadd.f32 %v977, 1e-05
        %v979 = vrsqrt.pop %v978
        %v980 = vmul.f32 %v979, %v978
        %v981 = vmul.f32 %v980, %v979
        %v982 = vmul.f32 0.5, %v981
        %v983 = vsub.f32 1.5, %v982
        %v984 = vmul.f32 %v979, %v983
        %vm985 = vweird.f32 %v978
        %vm986 = vweird.f32 %v979
        %vm987 = vmor %vm985, %vm986
        %v988 = vsel %vm987, %v979, %v984
        %v989 = vmul.f32 %v972, %v988
        %v990 = vmul.f32 %v989, %v458
        %v991 = vadd.f32 %v990, %v460
        %v993 = vsel %vm428, %v991, 0
        %995 = vmatpush.msra.mxu0 0.0
        %996 = vmatpush.msra.mxu0 0.0
        %997 = vmatpush.msra.mxu0 0.0
        %998 = vmatpush.msra.mxu0 0.0
        %999 = vmatpush.msra.mxu0 0.0
        %1000 = vmatpush.msra.mxu0 0.0
        %1001 = vmatpush.msra.mxu0 0.0
        %1002 = vmatpush.msra.mxu0 0.0
        %1003 = vmatpush.msra.mxu0 0.0
        %1004 = vmatpush.msra.mxu0 0.0
        %1005 = vmatpush.msra.mxu0 0.0
        %1006 = vmatpush.msra.mxu0 0.0
        %1007 = vmatpush.msra.mxu0 %v410
        %1008 = vmatpush.msra.mxu0 %v409
        %1009 = vmatpush.msra.mxu0 %v408
        %1010 = vmatpush.msra.mxu0 %v407
        %1011 = vmatmul.f32.gmra.mxu0 %v993
        %v1012 = vpop.f32.mrf.mxu0
        %v1013 = vadd.f32 0.0, %v1012
        %1014 = vdwg.mxu0
        %v1015 = vadd.f32 %v967, %v485
        %1017 = vrot.lane.b32.xlu0 %v1013, 96
        %v1018 = vpop.permute.xlu0 %1017
        %v1019 = vsel %vm490, %v1013, 0
        %v1021 = vsel %vm490, %v1018, 0
        %1023 = vmatpush.xpose.msra.mxu0 0.0
        %1024 = vmatpush.xpose.msra.mxu0 0.0
        %1025 = vmatpush.xpose.msra.mxu0 0.0
        %1026 = vmatpush.xpose.msra.mxu0 0.0
        %1027 = vmatpush.xpose.msra.mxu0 0.0
        %1028 = vmatpush.xpose.msra.mxu0 0.0
        %1029 = vmatpush.xpose.msra.mxu0 0.0
        %1030 = vmatpush.xpose.msra.mxu0 0.0
        %1031 = vmatpush.xpose.msra.mxu0 0.0
        %1032 = vmatpush.xpose.msra.mxu0 0.0
        %1033 = vmatpush.xpose.msra.mxu0 0.0
        %1034 = vmatpush.xpose.msra.mxu0 0.0
        %1035 = vmatpush.xpose.msra.mxu0 0.0
        %1036 = vmatpush.xpose.msra.mxu0 0.0
        %1037 = vmatpush.xpose.msra.mxu0 0.0
        %1038 = vmatpush.xpose.msra.mxu0 %v1021
        %1039 = vmatmul.f32.gmra.mxu0 %v1019
        %v1040 = vpop.f32.mrf.mxu0
        %v1041 = vadd.f32 0.0, %v1040
        %1042 = vdwg.mxu0
        %v1043 = vsel %vm490, %v1041, -inf
        %1044 = vmax.xlane.f32.xlu0 %v1043
        %v1045 = vpop.xlane.xlu0 %1044
        %v1046 = vsub.f32 %v1041, %v1045
        %v1047 = vmul.f32 %v1046, 1.442695
        %v1048 = vpow.pop %v1047
        %v1049 = vsel %vm490, %v1048, 0.0
        %1050 = vadd.xlane.f32.xlu0 %v1049
        %v1051 = vpop.xlane.xlu0 %1050
        %v1052 = vrcp.pop %v1051
        %v1053 = vmul.f32 %v1048, %v1052
        %1054 = vrot.lane.b32.xlu0 %v1013, 64
        %v1055 = vpop.permute.xlu0 %1054
        %v1058 = vsel %vm490, %v1053, 0
        %1060 = vmatpush.msra.mxu0 0.0
        %1061 = vmatpush.msra.mxu0 0.0
        %1062 = vmatpush.msra.mxu0 0.0
        %1063 = vmatpush.msra.mxu0 0.0
        %1064 = vmatpush.msra.mxu0 0.0
        %1065 = vmatpush.msra.mxu0 0.0
        %1066 = vmatpush.msra.mxu0 0.0
        %1067 = vmatpush.msra.mxu0 0.0
        %1068 = vmatpush.msra.mxu0 0.0
        %1069 = vmatpush.msra.mxu0 0.0
        %1070 = vmatpush.msra.mxu0 0.0
        %1071 = vmatpush.msra.mxu0 0.0
        %1072 = vmatpush.msra.mxu0 0.0
        %1073 = vmatpush.msra.mxu0 0.0
        %1074 = vmatpush.msra.mxu0 0.0
        %1075 = vmatpush.msra.mxu0 %v1055
        %1076 = vmatmul.f32.gmra.mxu0 %v1058
        %v1077 = vpop.f32.mrf.mxu0
        %v1078 = vadd.f32 0.0, %v1077
        %1079 = vdwg.mxu0
        %v1081 = vsel %vm490, %v1078, 0
        %1083 = vmatpush.msra.mxu0 0.0
        %1084 = vmatpush.msra.mxu0 0.0
        %1085 = vmatpush.msra.mxu0 0.0
        %1086 = vmatpush.msra.mxu0 0.0
        %1087 = vmatpush.msra.mxu0 0.0
        %1088 = vmatpush.msra.mxu0 0.0
        %1089 = vmatpush.msra.mxu0 0.0
        %1090 = vmatpush.msra.mxu0 0.0
        %1091 = vmatpush.msra.mxu0 0.0
        %1092 = vmatpush.msra.mxu0 0.0
        %1093 = vmatpush.msra.mxu0 0.0
        %1094 = vmatpush.msra.mxu0 0.0
        %1095 = vmatpush.msra.mxu0 0.0
        %1096 = vmatpush.msra.mxu0 0.0
        %1097 = vmatpush.msra.mxu0 0.0
        %1098 = vmatpush.msra.mxu0 %v411
        %1099 = vmatmul.f32.gmra.mxu0 %v1081
        %v1100 = vpop.f32.mrf.mxu0
        %v1101 = vadd.f32 0.0, %v1100
        %1102 = vdwg.mxu0
        %v1103 = vadd.f32 %v1015, %v1101
        %1104 = vrot.lane.b32.xlu0 %v1013, 120
        %v1105 = vpop.permute.xlu0 %1104
        %1106 = vrot.lane.b32.xlu0 %v1013, 88
        %v1107 = vpop.permute.xlu0 %1106
        %v1108 = vsel %vm490, %v1105, 0
        %v1110 = vsel %vm490, %v1107, 0
        %1112 = vmatpush.xpose.msra.mxu0 0.0
        %1113 = vmatpush.xpose.msra.mxu0 0.0
        %1114 = vmatpush.xpose.msra.mxu0 0.0
        %1115 = vmatpush.xpose.msra.mxu0 0.0
        %1116 = vmatpush.xpose.msra.mxu0 0.0
        %1117 = vmatpush.xpose.msra.mxu0 0.0
        %1118 = vmatpush.xpose.msra.mxu0 0.0
        %1119 = vmatpush.xpose.msra.mxu0 0.0
        %1120 = vmatpush.xpose.msra.mxu0 0.0
        %1121 = vmatpush.xpose.msra.mxu0 0.0
        %1122 = vmatpush.xpose.msra.mxu0 0.0
        %1123 = vmatpush.xpose.msra.mxu0 0.0
        %1124 = vmatpush.xpose.msra.mxu0 0.0
        %1125 = vmatpush.xpose.msra.mxu0 0.0
        %1126 = vmatpush.xpose.msra.mxu0 0.0
        %1127 = vmatpush.xpose.msra.mxu0 %v1110
        %1128 = vmatmul.f32.gmra.mxu0 %v1108
        %v1129 = vpop.f32.mrf.mxu0
        %v1130 = vadd.f32 0.0, %v1129
        %1131 = vdwg.mxu0
        %v1132 = vsel %vm490, %v1130, -inf
        %1133 = vmax.xlane.f32.xlu0 %v1132
        %v1134 = vpop.xlane.xlu0 %1133
        %v1135 = vsub.f32 %v1130, %v1134
        %v1136 = vmul.f32 %v1135, 1.442695
        %v1137 = vpow.pop %v1136
        %v1138 = vsel %vm490, %v1137, 0.0
        %1139 = vadd.xlane.f32.xlu0 %v1138
        %v1140 = vpop.xlane.xlu0 %1139
        %v1141 = vrcp.pop %v1140
        %v1142 = vmul.f32 %v1137, %v1141
        %1143 = vrot.lane.b32.xlu0 %v1013, 56
        %v1144 = vpop.permute.xlu0 %1143
        %v1147 = vsel %vm490, %v1142, 0
        %1149 = vmatpush.msra.mxu0 0.0
        %1150 = vmatpush.msra.mxu0 0.0
        %1151 = vmatpush.msra.mxu0 0.0
        %1152 = vmatpush.msra.mxu0 0.0
        %1153 = vmatpush.msra.mxu0 0.0
        %1154 = vmatpush.msra.mxu0 0.0
        %1155 = vmatpush.msra.mxu0 0.0
        %1156 = vmatpush.msra.mxu0 0.0
        %1157 = vmatpush.msra.mxu0 0.0
        %1158 = vmatpush.msra.mxu0 0.0
        %1159 = vmatpush.msra.mxu0 0.0
        %1160 = vmatpush.msra.mxu0 0.0
        %1161 = vmatpush.msra.mxu0 0.0
        %1162 = vmatpush.msra.mxu0 0.0
        %1163 = vmatpush.msra.mxu0 0.0
        %1164 = vmatpush.msra.mxu0 %v1144
        %1165 = vmatmul.f32.gmra.mxu0 %v1147
        %v1166 = vpop.f32.mrf.mxu0
        %v1167 = vadd.f32 0.0, %v1166
        %1168 = vdwg.mxu0
        %v1170 = vsel %vm490, %v1167, 0
        %1172 = vmatpush.msra.mxu0 0.0
        %1173 = vmatpush.msra.mxu0 0.0
        %1174 = vmatpush.msra.mxu0 0.0
        %1175 = vmatpush.msra.mxu0 0.0
        %1176 = vmatpush.msra.mxu0 0.0
        %1177 = vmatpush.msra.mxu0 0.0
        %1178 = vmatpush.msra.mxu0 0.0
        %1179 = vmatpush.msra.mxu0 0.0
        %1180 = vmatpush.msra.mxu0 0.0
        %1181 = vmatpush.msra.mxu0 0.0
        %1182 = vmatpush.msra.mxu0 0.0
        %1183 = vmatpush.msra.mxu0 0.0
        %1184 = vmatpush.msra.mxu0 0.0
        %1185 = vmatpush.msra.mxu0 0.0
        %1186 = vmatpush.msra.mxu0 0.0
        %1187 = vmatpush.msra.mxu0 %v412
        %1188 = vmatmul.f32.gmra.mxu0 %v1170
        %v1189 = vpop.f32.mrf.mxu0
        %v1190 = vadd.f32 0.0, %v1189
        %1191 = vdwg.mxu0
        %v1192 = vadd.f32 %v1103, %v1190
        %1193 = vrot.lane.b32.xlu0 %v1013, 112
        %v1194 = vpop.permute.xlu0 %1193
        %1195 = vrot.lane.b32.xlu0 %v1013, 80
        %v1196 = vpop.permute.xlu0 %1195
        %v1197 = vsel %vm490, %v1194, 0
        %v1199 = vsel %vm490, %v1196, 0
        %1201 = vmatpush.xpose.msra.mxu0 0.0
        %1202 = vmatpush.xpose.msra.mxu0 0.0
        %1203 = vmatpush.xpose.msra.mxu0 0.0
        %1204 = vmatpush.xpose.msra.mxu0 0.0
        %1205 = vmatpush.xpose.msra.mxu0 0.0
        %1206 = vmatpush.xpose.msra.mxu0 0.0
        %1207 = vmatpush.xpose.msra.mxu0 0.0
        %1208 = vmatpush.xpose.msra.mxu0 0.0
        %1209 = vmatpush.xpose.msra.mxu0 0.0
        %1210 = vmatpush.xpose.msra.mxu0 0.0
        %1211 = vmatpush.xpose.msra.mxu0 0.0
        %1212 = vmatpush.xpose.msra.mxu0 0.0
        %1213 = vmatpush.xpose.msra.mxu0 0.0
        %1214 = vmatpush.xpose.msra.mxu0 0.0
        %1215 = vmatpush.xpose.msra.mxu0 0.0
        %1216 = vmatpush.xpose.msra.mxu0 %v1199
        %1217 = vmatmul.f32.gmra.mxu0 %v1197
        %v1218 = vpop.f32.mrf.mxu0
        %v1219 = vadd.f32 0.0, %v1218
        %1220 = vdwg.mxu0
        %v1221 = vsel %vm490, %v1219, -inf
        %1222 = vmax.xlane.f32.xlu0 %v1221
        %v1223 = vpop.xlane.xlu0 %1222
        %v1224 = vsub.f32 %v1219, %v1223
        %v1225 = vmul.f32 %v1224, 1.442695
        %v1226 = vpow.pop %v1225
        %v1227 = vsel %vm490, %v1226, 0.0
        %1228 = vadd.xlane.f32.xlu0 %v1227
        %v1229 = vpop.xlane.xlu0 %1228
        %v1230 = vrcp.pop %v1229
        %v1231 = vmul.f32 %v1226, %v1230
        %1232 = vrot.lane.b32.xlu0 %v1013, 48
        %v1233 = vpop.permute.xlu0 %1232
        %v1236 = vsel %vm490, %v1231, 0
        %1238 = vmatpush.msra.mxu0 0.0
        %1239 = vmatpush.msra.mxu0 0.0
        %1240 = vmatpush.msra.mxu0 0.0
        %1241 = vmatpush.msra.mxu0 0.0
        %1242 = vmatpush.msra.mxu0 0.0
        %1243 = vmatpush.msra.mxu0 0.0
        %1244 = vmatpush.msra.mxu0 0.0
        %1245 = vmatpush.msra.mxu0 0.0
        %1246 = vmatpush.msra.mxu0 0.0
        %1247 = vmatpush.msra.mxu0 0.0
        %1248 = vmatpush.msra.mxu0 0.0
        %1249 = vmatpush.msra.mxu0 0.0
        %1250 = vmatpush.msra.mxu0 0.0
        %1251 = vmatpush.msra.mxu0 0.0
        %1252 = vmatpush.msra.mxu0 0.0
        %1253 = vmatpush.msra.mxu0 %v1233
        %1254 = vmatmul.f32.gmra.mxu0 %v1236
        %v1255 = vpop.f32.mrf.mxu0
        %v1256 = vadd.f32 0.0, %v1255
        %1257 = vdwg.mxu0
        %v1259 = vsel %vm490, %v1256, 0
        %1261 = vmatpush.msra.mxu0 0.0
        %1262 = vmatpush.msra.mxu0 0.0
        %1263 = vmatpush.msra.mxu0 0.0
        %1264 = vmatpush.msra.mxu0 0.0
        %1265 = vmatpush.msra.mxu0 0.0
        %1266 = vmatpush.msra.mxu0 0.0
        %1267 = vmatpush.msra.mxu0 0.0
        %1268 = vmatpush.msra.mxu0 0.0
        %1269 = vmatpush.msra.mxu0 0.0
        %1270 = vmatpush.msra.mxu0 0.0
        %1271 = vmatpush.msra.mxu0 0.0
        %1272 = vmatpush.msra.mxu0 0.0
        %1273 = vmatpush.msra.mxu0 0.0
        %1274 = vmatpush.msra.mxu0 0.0
        %1275 = vmatpush.msra.mxu0 0.0
        %1276 = vmatpush.msra.mxu0 %v413
        %1277 = vmatmul.f32.gmra.mxu0 %v1259
        %v1278 = vpop.f32.mrf.mxu0
        %v1279 = vadd.f32 0.0, %v1278
        %1280 = vdwg.mxu0
        %v1281 = vadd.f32 %v1192, %v1279
        %1282 = vrot.lane.b32.xlu0 %v1013, 104
        %v1283 = vpop.permute.xlu0 %1282
        %1284 = vrot.lane.b32.xlu0 %v1013, 72
        %v1285 = vpop.permute.xlu0 %1284
        %v1286 = vsel %vm490, %v1283, 0
        %v1288 = vsel %vm490, %v1285, 0
        %1290 = vmatpush.xpose.msra.mxu0 0.0
        %1291 = vmatpush.xpose.msra.mxu0 0.0
        %1292 = vmatpush.xpose.msra.mxu0 0.0
        %1293 = vmatpush.xpose.msra.mxu0 0.0
        %1294 = vmatpush.xpose.msra.mxu0 0.0
        %1295 = vmatpush.xpose.msra.mxu0 0.0
        %1296 = vmatpush.xpose.msra.mxu0 0.0
        %1297 = vmatpush.xpose.msra.mxu0 0.0
        %1298 = vmatpush.xpose.msra.mxu0 0.0
        %1299 = vmatpush.xpose.msra.mxu0 0.0
        %1300 = vmatpush.xpose.msra.mxu0 0.0
        %1301 = vmatpush.xpose.msra.mxu0 0.0
        %1302 = vmatpush.xpose.msra.mxu0 0.0
        %1303 = vmatpush.xpose.msra.mxu0 0.0
        %1304 = vmatpush.xpose.msra.mxu0 0.0
        %1305 = vmatpush.xpose.msra.mxu0 %v1288
        %1306 = vmatmul.f32.gmra.mxu0 %v1286
        %v1307 = vpop.f32.mrf.mxu0
        %v1308 = vadd.f32 0.0, %v1307
        %1309 = vdwg.mxu0
        %v1310 = vsel %vm490, %v1308, -inf
        %1311 = vmax.xlane.f32.xlu0 %v1310
        %v1312 = vpop.xlane.xlu0 %1311
        %v1313 = vsub.f32 %v1308, %v1312
        %v1314 = vmul.f32 %v1313, 1.442695
        %v1315 = vpow.pop %v1314
        %v1316 = vsel %vm490, %v1315, 0.0
        %1317 = vadd.xlane.f32.xlu0 %v1316
        %v1318 = vpop.xlane.xlu0 %1317
        %v1319 = vrcp.pop %v1318
        %v1320 = vmul.f32 %v1315, %v1319
        %1321 = vrot.lane.b32.xlu0 %v1013, 40
        %v1322 = vpop.permute.xlu0 %1321
        %v1325 = vsel %vm490, %v1320, 0
        %1327 = vmatpush.msra.mxu0 0.0
        %1328 = vmatpush.msra.mxu0 0.0
        %1329 = vmatpush.msra.mxu0 0.0
        %1330 = vmatpush.msra.mxu0 0.0
        %1331 = vmatpush.msra.mxu0 0.0
        %1332 = vmatpush.msra.mxu0 0.0
        %1333 = vmatpush.msra.mxu0 0.0
        %1334 = vmatpush.msra.mxu0 0.0
        %1335 = vmatpush.msra.mxu0 0.0
        %1336 = vmatpush.msra.mxu0 0.0
        %1337 = vmatpush.msra.mxu0 0.0
        %1338 = vmatpush.msra.mxu0 0.0
        %1339 = vmatpush.msra.mxu0 0.0
        %1340 = vmatpush.msra.mxu0 0.0
        %1341 = vmatpush.msra.mxu0 0.0
        %1342 = vmatpush.msra.mxu0 %v1322
        %1343 = vmatmul.f32.gmra.mxu0 %v1325
        %v1344 = vpop.f32.mrf.mxu0
        %v1345 = vadd.f32 0.0, %v1344
        %1346 = vdwg.mxu0
        %v1348 = vsel %vm490, %v1345, 0
        %1350 = vmatpush.msra.mxu0 0.0
        %1351 = vmatpush.msra.mxu0 0.0
        %1352 = vmatpush.msra.mxu0 0.0
        %1353 = vmatpush.msra.mxu0 0.0
        %1354 = vmatpush.msra.mxu0 0.0
        %1355 = vmatpush.msra.mxu0 0.0
        %1356 = vmatpush.msra.mxu0 0.0
        %1357 = vmatpush.msra.mxu0 0.0
        %1358 = vmatpush.msra.mxu0 0.0
        %1359 = vmatpush.msra.mxu0 0.0
        %1360 = vmatpush.msra.mxu0 0.0
        %1361 = vmatpush.msra.mxu0 0.0
        %1362 = vmatpush.msra.mxu0 0.0
        %1363 = vmatpush.msra.mxu0 0.0
        %1364 = vmatpush.msra.mxu0 0.0
        %1365 = vmatpush.msra.mxu0 %v414
        %1366 = vmatmul.f32.gmra.mxu0 %v1348
        %v1367 = vpop.f32.mrf.mxu0
        %v1368 = vadd.f32 0.0, %v1367
        %1369 = vdwg.mxu0
        %v1370 = vadd.f32 %v1281, %v1368
        %v1371 = vsel %vm428, %v1370, 0.0
        %1372 = vadd.xlane.f32.xlu0 %v1371
        %v1373 = vpop.xlane.xlu0 %1372
        %v1374 = vmul.f32 %v1373, %v438
        %v1375 = vsub.f32 %v1370, %v1374
        %v1376 = vmul.f32 %v1375, %v1375
        %v1377 = vsel %vm428, %v1376, 0.0
        %1378 = vadd.xlane.f32.xlu0 %v1377
        %v1379 = vpop.xlane.xlu0 %1378
        %v1380 = vmul.f32 %v1379, %v438
        %v1381 = vadd.f32 %v1380, 1e-05
        %v1382 = vrsqrt.pop %v1381
        %v1383 = vmul.f32 %v1382, %v1381
        %v1384 = vmul.f32 %v1383, %v1382
        %v1385 = vmul.f32 0.5, %v1384
        %v1386 = vsub.f32 1.5, %v1385
        %v1387 = vmul.f32 %v1382, %v1386
        %vm1388 = vweird.f32 %v1381
        %vm1389 = vweird.f32 %v1382
        %vm1390 = vmor %vm1388, %vm1389
        %v1391 = vsel %vm1390, %v1382, %v1387
        %v1392 = vmul.f32 %v1375, %v1391
        %v1393 = vmul.f32 %v1392, %v865
        %v1394 = vadd.f32 %v1393, %v867
        %v1396 = vsel %vm428, %v1394, 0
        %1398 = vmatpush.msra.mxu0 0.0
        %1399 = vmatpush.msra.mxu0 0.0
        %1400 = vmatpush.msra.mxu0 0.0
        %1401 = vmatpush.msra.mxu0 0.0
        %1402 = vmatpush.msra.mxu0 0.0
        %1403 = vmatpush.msra.mxu0 0.0
        %1404 = vmatpush.msra.mxu0 0.0
        %1405 = vmatpush.msra.mxu0 0.0
        %1406 = vmatpush.msra.mxu0 0.0
        %1407 = vmatpush.msra.mxu0 0.0
        %1408 = vmatpush.msra.mxu0 0.0
        %1409 = vmatpush.msra.mxu0 0.0
        %1410 = vmatpush.msra.mxu0 %v418
        %1411 = vmatpush.msra.mxu0 %v417
        %1412 = vmatpush.msra.mxu0 %v416
        %1413 = vmatpush.msra.mxu0 %v415
        %1414 = vmatmul.f32.gmra.mxu0 %v1396
        %v1415 = vpop.f32.mrf.mxu0
        %v1416 = vadd.f32 %v870, %v1415
        %1417 = vdwg.mxu0
        %v1418 = vmul.f32 %v1416, 0.5
        %v1419 = vmul.f32 %v1416, 0.70710677
        %v1420 = vmul.f32 %v1419, %v1419
        %v1421 = vmin.f32 16.0, %v1420
        %v1422 = vmul.f32 %v1421, 2.1237322e-06
        %v1423 = vadd.f32 %v1422, 0.00028619796
        %v1424 = vmul.f32 %v1421, %v1423
        %v1425 = vadd.f32 %v1424, 0.0036580483
        %v1426 = vmul.f32 %v1421, %v1425
        %v1427 = vadd.f32 %v1426, 0.05243302
        %v1428 = vmul.f32 %v1421, %v1427
        %v1429 = vadd.f32 %v1428, 0.18741608
        %v1430 = vmul.f32 %v1421, %v1429
        %v1431 = vadd.f32 %v1430, 1.1283791
        %v1432 = vmul.f32 %v1419, %v1431
        %v1433 = vmul.f32 %v1421, 3.8918573e-05
        %v1434 = vadd.f32 %v1433, 0.001143296
        %v1435 = vmul.f32 %v1421, %v1434
        %v1436 = vadd.f32 %v1435, 0.014752088
        %v1437 = vmul.f32 %v1421, %v1436
        %v1438 = vadd.f32 %v1437, 0.112945676
        %v1439 = vmul.f32 %v1421, %v1438
        %v1440 = vadd.f32 %v1439, 0.4994258
        %v1441 = vmul.f32 %v1421, %v1440
        %v1442 = vadd.f32 %v1441, 1.0
        %v1443 = vrcp.pop %v1442
        %v1444 = vmul.f32 %v1442, %v1443
        %v1445 = vsub.f32 1.0, %v1444
        %v1446 = vmul.f32 %v1443, %v1445
        %v1447 = vadd.f32 %v1443, %v1446
        %vm1448 = vweird.f32 %v1442
        %vm1449 = vweird.f32 %v1443
        %vm1450 = vmor %vm1448, %vm1449
        %v1451 = vsel %vm1450, %v1443, %v1447
        %v1452 = vand.u32 2147483647, %v1442
        %vm1453 = vcmp.eq.f32.partialorder %v1452, 8.507059e+37
        %v1454 = vand.u32 %v1442, 2147483648
        %v1455 = vor.u32 1.1754944e-38, %v1454
        %v1456 = vsel %vm1453, %v1455, %v1451
        %v1457 = vmul.f32 %v1432, %v1456
        %v1458 = vmin.f32 %v1457, 1.0
        %v1459 = vmax.f32 %v1458, -1.0
        %v1460 = vadd.f32 %v1459, 1.0
        %v1461 = vmul.f32 %v1418, %v1460
        %v1463 = vsel %vm940, %v1461, 0
        %1465 = vmatpush.msra.mxu0 0.0
        %1466 = vmatpush.msra.mxu0 0.0
        %1467 = vmatpush.msra.mxu0 0.0
        %1468 = vmatpush.msra.mxu0 0.0
        %1469 = vmatpush.msra.mxu0 0.0
        %1470 = vmatpush.msra.mxu0 0.0
        %1471 = vmatpush.msra.mxu0 0.0
        %1472 = vmatpush.msra.mxu0 0.0
        %1473 = vmatpush.msra.mxu0 %v426
        %1474 = vmatpush.msra.mxu0 %v425
        %1475 = vmatpush.msra.mxu0 %v424
        %1476 = vmatpush.msra.mxu0 %v423
        %1477 = vmatpush.msra.mxu0 %v422
        %1478 = vmatpush.msra.mxu0 %v421
        %1479 = vmatpush.msra.mxu0 %v420
        %1480 = vmatpush.msra.mxu0 %v419
        %1481 = vmatmul.f32.gmra.mxu0 %v1463
        %v1482 = vpop.f32.mrf.mxu0
        %v1483 = vadd.f32 %v939, %v1482
        %1484 = vdwg.mxu0
        %v1485 = vadd.f32 %v1483, %v1370
        %1486 = vst.msk [vmem:[%s966] sm:$0xff] %vm428, %v1485
        %p1487 = scmp.eq.s32.totalorder %s24, 1
        // Predicated region
        $region53: #{tpu_custom_call.1} parent=47 // pred_check
          %p1488 = pneg %p1487
        $region54: #{tpu_custom_call.1} parent=47 // pred_check_branch
          %1490 = sbr.rel (%p1488) target = $region56
        $region55: #{tpu_custom_call.1} parent=47 // pred_region
          %v1491 = vld [vmem:[#allocation2] sm:$0xff]
          %v1492 = vld [vmem:[#allocation2 + $0x8] sm:$0xff]
          %1493 = vst.msk [vmem:[#allocation3] sm:$0xff] %vm428, %v1491
          %1494 = vst.msk [vmem:[#allocation3 + $0x8] sm:$0xff] %vm428, %v1492
        $region56: #{tpu_custom_call.1} parent=47 // pred_fallthru
          _
        // Predicated region
        $region57: #{tpu_custom_call.1} parent=47 // pred_check
          %p1495 = pneg %p231
        $region58: #{tpu_custom_call.1} parent=47 // pred_check_branch
          %1497 = sbr.rel (%p1495) target = $region60
        $region59: #{tpu_custom_call.1} parent=47 // pred_region
          %s1498 = smul.u32 2, %s23
          %1500 = vsyncadd [#allocation4], 0
          %s1501 = smul.addr %s1498, 8
          %s1502 = scalar_lea.hbm %s7, %s1501
          %s1503 = sshll.u32 [#allocation3], 4
          %s1504 = int_to_ptr.vmem [resolvable:$true] %s1503
          %s1505 = sshll.u32 %s1502, 4
          %s1506 = int_to_ptr.hbm [resolvable:$true] %s1505
          %1511 = dma.vmem_to_hbm [thread:$0]  %s1504, 256, %s1506, [#allocation4], 128, 128, 8
        $region60: #{tpu_custom_call.1} parent=47 // pred_fallthru
          _
        // Predicated region
        $region61: #{tpu_custom_call.1} parent=47 // pred_check
          %p1512 = pneg %p231
        $region62: #{tpu_custom_call.1} parent=47 // pred_check_branch
          %1514 = sbr.rel (%p1512) target = $region64
        $region63: #{tpu_custom_call.1} parent=47 // pred_region
          %1516 = dma.done [#allocation4], 256
        $region64: #{tpu_custom_call.1} parent=47 // pred_fallthru
          _
      $region48: #{tpu_custom_call.1} parent=5 // pred_fallthru
        _
      %p1517 = scmp.le.s32.totalorder 2, %s14
      // Predicated region
      $region65: #{tpu_custom_call.1} parent=5 // pred_check
        %p1518 = pneg %p1517
      $region66: #{tpu_custom_call.1} parent=5 // pred_check_branch
        %1520 = sbr.rel (%p1518) target = $region68
      $region67: #{tpu_custom_call.1} parent=5 // pred_region
        %s1521 = ssub.s32 %s14, 2
      $region68: #{tpu_custom_call.1} parent=5 // pred_fallthru
        _
    $region6: #{tpu_custom_call.1} parent=1 // loop_footer
      %s18 = sadd.s32 1, %s14
    $region7: #{tpu_custom_call.1} parent=1 // loop_footer_branch
      %13 = sbr.rel target = $region3
    $region8: #{tpu_custom_call.1} parent=1 // loop_exit
      _
    %1522 = vsyncpa [#allocation4], 1
    %s1523 = scalar_lea.sflag [#allocation4], 1
    %1524 = vsyncpa %s1523, 1

</llo_original>
